<compile_context>
chip_gen: v6e
topology: v6e:2x2x1
jax: 0.10.0
libtpu: 0.0.40
codegen_flags: <defaults>
</compile_context>

<pallas_src>
import numpy as np
import jax
import jax.numpy as jnp
from jax.experimental import pallas as pl
from jax.experimental.pallas import tpu as pltpu

# ---------------- configuration (small synthetic SeriesNetQ) ----------------
BATCH = 2
INPUT_LENGTH = 32            # input_shape[0]
INPUT_DIM = 1                # input_shape[1]  (must be 1 for >1 stacked layers)
CHANNEL_DIMS = [8, 8, 8]
KERNELS = [2, 2, 2]
DILATIONS = [1, 2, 4]
DROPOUTS = [0.0, 0.0, 0.0]   # inference: nn.Dropout == identity
D_MODEL = 32
N_ASSETS = 3
N_ACTIONS = 3
OUTPUT_SHAPE = (N_ASSETS, N_ACTIONS)
N_OUT = N_ASSETS * N_ACTIONS
PORT_DIM = N_ASSETS + 1
N_LAYERS = len(CHANNEL_DIMS)
D = CHANNEL_DIMS[0]
L = INPUT_LENGTH
DL = D * L                   # 256 : lane-dense per-layer latent width (2 vregs wide)
K = KERNELS[0]
assert all(c == D for c in CHANNEL_DIMS)
assert INPUT_DIM == 1        # layers[1:] take 1 input channel, as in the module

# -------- head slab layout: one (HEAD_ROWS, D_MODEL) f32 slab ----------------
# Every slice taken in-kernel is full lane width; weight blocks start at
# 8-aligned rows (bias rows are single sublanes, read once per grid step).
PORT_PAD = 8                                   # portfolio padded 4 -> 8 (zero lanes)
ROW_WCE = 0                                    # rows [0, L): conv_output_embed W^T
ROW_WPE = L                                    # rows [L, L+8): port_embed W^T (zero-padded)
ROW_BCE = ROW_WPE + PORT_PAD                   # 40 : conv_output_embed bias
ROW_BPE = ROW_BCE + 1                          # 41 : port_embed bias
ROW_WOUT = ((ROW_BPE + 1 + 7) // 8) * 8        # 48 : head W^T (cols >= N_OUT are zero)
ROW_BOUT = ROW_WOUT + D_MODEL                  # 80 : head bias (cols >= N_OUT are zero)
HEAD_ROWS = ((ROW_BOUT + 1 + 7) // 8) * 8      # 88 (multiple of 8)


# ----------------------------- GELU (erf form) -------------------------------
# torch.nn.GELU default is the exact erf form.  We use the Abramowitz & Stegun
# 7.1.26 rational approximation (|err| < 1.5e-7 in erf), which is numerically
# equivalent to torch's exact-erf GELU at the tolerances tested below.  The
# kernel variant routes the divide through the EUP (pl.reciprocal approx);
# the reference variant uses an exact divide so the self-test isolates
# kernel-specific error sources (EUP reciprocal, MXU rounding).
_A1, _A2, _A3, _A4, _A5 = 0.254829592, -0.284496736, 1.421413741, -1.453152027, 1.061405429
_P = 0.3275911
_INV_SQRT2 = 0.7071067811865476


def _gelu_impl(x, recip_fn):
    u = x * _INV_SQRT2
    au = jnp.abs(u)
    t = recip_fn(1.0 + _P * au)
    poly = ((((_A5 * t + _A4) * t + _A3) * t + _A2) * t + _A1) * t
    erf_au = 1.0 - poly * jnp.exp(-au * au)
    erf_u = jnp.where(u >= 0, erf_au, -erf_au)
    return 0.5 * x * (1.0 + erf_u)


def _gelu(x):        # in-kernel: divide on the EUP slot (off the VALU chain)
    return _gelu_impl(x, lambda v: pl.reciprocal(v, approx=True))


def _gelu_ref(x):    # reference: exact divide
    return _gelu_impl(x, lambda v: 1.0 / v)


# ------------------------------ Pallas kernel --------------------------------
def seriesnet_kernel(
    price_ref,   # VMEM (TB, L)                     layer-0 input (channel squeezed)
    port_ref,    # VMEM (TB, PORT_PAD)              portfolio (zero-padded to 8 lanes)
    convm_ref,   # VMEM (N_LAYERS, L, D*L)          causal-pad + dilated taps, folded
    convr_ref,   # VMEM (N_LAYERS, 2, D*L, L)       [0]=conv_compress, [1]=skip_conv
    head_ref,    # VMEM (HEAD_ROWS, D_MODEL)        packed dense weights / biases
    q_ref,       # VMEM (TB, D_MODEL)               q in the first N_OUT lanes
):
    x = price_ref[...].astype(jnp.float32)            # (TB, L)  residual stream
    skip = jnp.zeros_like(x)                          # (TB, L)  skip accumulator

    for li in range(N_LAYERS):
        # conv_embed = ReplicationPad1d + dilated Conv1d(1->D, bias=False) + GELU.
        # The pad + all K taps for all D channels are folded into ONE constant
        # (L, D*L) matrix, so this is a single MXU matmul; the only VPU/EUP work
        # on the wide tensor is the lane-dense (TB, 256) GELU.
        pre = jnp.dot(x, convm_ref[li, :, :], preferred_element_type=jnp.float32)
        latent = _gelu(pre)                           # (TB, D*L) lane-dense
        # 1x1 conv_compress (residual add, C_in == 1) and skip_conv (dropout ==
        # identity at inference) as channel-reduction matmuls -> (TB, L) each.
        x = x + jnp.dot(latent, convr_ref[li, 0, :, :], preferred_element_type=jnp.float32)
        skip = skip + jnp.dot(latent, convr_ref[li, 1, :, :], preferred_element_type=jnp.float32)

    out = _gelu(skip)                                 # GELU(out.view(B, -1))
    port = port_ref[...].astype(jnp.float32)          # (TB, PORT_PAD)

    w_ce = head_ref[ROW_WCE:ROW_WCE + L, :]           # (L, D_MODEL)
    w_pe = head_ref[ROW_WPE:ROW_WPE + PORT_PAD, :]    # (PORT_PAD, D_MODEL)
    b_ce = head_ref[ROW_BCE:ROW_BCE + 1, :]           # (1, D_MODEL)
    b_pe = head_ref[ROW_BPE:ROW_BPE + 1, :]
    price_emb = jnp.dot(out, w_ce, preferred_element_type=jnp.float32) + b_ce
    port_emb = jnp.dot(port, w_pe, preferred_element_type=jnp.float32) + b_pe
    h = _gelu(price_emb * port_emb)                   # GELU(state_emb)

    # output head (NormalHeadDQN): Linear(d_model -> n_assets*n_actions),
    # weight/bias zero-padded to D_MODEL lanes so no sub-lane slicing is needed.
    w_out = head_ref[ROW_WOUT:ROW_WOUT + D_MODEL, :]  # (D_MODEL, D_MODEL)
    b_out = head_ref[ROW_BOUT:ROW_BOUT + 1, :]
    q = jnp.dot(h, w_out, preferred_element_type=jnp.float32) + b_out
    q_ref[...] = q.astype(q_ref.dtype)


# ------------------------------ wrapper ---------------------------------------
def _num_tensorcores():
    """TensorCores per device (2 on v7x megacore parts, 1 on v5e/v6e)."""
    try:
        d = jax.devices()[0]
        for attr in ("num_cores", "core_count"):
            v = getattr(d, attr, None)
            if isinstance(v, int) and v > 0:
                return v
    except Exception:
        pass
    return 1


def _batch_tile(B, n_cores):
    """Largest batch tile (<=512, multiple of 8, dividing B) that still gives
    every TensorCore at least one grid step.  Single-core parts (v5e/v6e) get
    the maximal tile; v7x gets >= 2 steps so both cores run.  Batches that are
    not multiples of 8 fall back to a single grid step (correct, unsharded)."""
    if B <= 8:
        return B
    best = None
    for tb in (512, 256, 128, 64, 32, 16, 8):
        if B % tb == 0:
            if best is None:
                best = tb
            if B // tb >= n_cores:
                return tb
    return best if best is not None else B


def seriesnet_q_forward(convm, convr, head, price, port):
    B, Lp, C = price.shape
    assert C == INPUT_DIM == 1 and Lp == INPUT_LENGTH
    price2d = price[:, :, 0].astype(jnp.float32)                       # (B, L)
    port8 = jnp.pad(port.astype(jnp.float32),
                    ((0, 0), (0, PORT_PAD - PORT_DIM)))                # (B, 8)

    TB = _batch_tile(B, _num_tensorcores())
    assert B % TB == 0
    grid = (B // TB,)

    q32 = pl.pallas_call(
        seriesnet_kernel,
        out_shape=jax.ShapeDtypeStruct((B, D_MODEL), jnp.float32),
        grid_spec=pltpu.PrefetchScalarGridSpec(
            num_scalar_prefetch=0,
            grid=grid,
            in_specs=[
                pl.BlockSpec((TB, L), lambda i: (i, 0)),                       # price
                pl.BlockSpec((TB, PORT_PAD), lambda i: (i, 0)),                # portfolio
                pl.BlockSpec((N_LAYERS, L, DL), lambda i: (0, 0, 0)),          # conv proj slab
                pl.BlockSpec((N_LAYERS, 2, DL, L), lambda i: (0, 0, 0, 0)),    # conv reduce slab
                pl.BlockSpec((HEAD_ROWS, D_MODEL), lambda i: (0, 0)),          # head slab
            ],
            out_specs=pl.BlockSpec((TB, D_MODEL), lambda i: (i, 0)),
        ),
        compiler_params=pltpu.CompilerParams(
            dimension_semantics=("parallel",)),   # batch tiles shard across TCs on v7x
    )(price2d, port8, convm, convr, head)

    return q32[:, :N_OUT].reshape(B, *OUTPUT_SHAPE)


# ----------------------- deterministic parameter init -------------------------
def init_params(key):
    ks = jax.random.split(key, 9)
    std = 0.05  # SeriesNetQ.init: normal(mean=0, std=0.05) for Conv1d / Linear weights
    return dict(
        wproj=jax.random.normal(ks[0], (N_LAYERS, D, 1, K), jnp.float32) * std,  # Conv1d(1,D,K)
        wcomp=jax.random.normal(ks[1], (N_LAYERS, 1, D, 1), jnp.float32) * std,  # Conv1d(D,1,1)
        wskip=jax.random.normal(ks[2], (N_LAYERS, 1, D, 1), jnp.float32) * std,  # Conv1d(D,1,1)
        wce=jax.random.normal(ks[3], (D_MODEL, INPUT_LENGTH), jnp.float32) * std,  # Linear(L, dm)
        bce=jax.random.normal(ks[4], (D_MODEL,), jnp.float32) * std,
        wpe=jax.random.normal(ks[5], (D_MODEL, PORT_DIM), jnp.float32) * std,      # Linear(P, dm)
        bpe=jax.random.normal(ks[6], (D_MODEL,), jnp.float32) * std,
        wout=jax.random.normal(ks[7], (N_OUT, D_MODEL), jnp.float32) * std,        # head Linear
        bout=jax.random.normal(ks[8], (N_OUT,), jnp.float32) * std,
    )


def pack_params(p):
    """Pack weights into the three matmul-ready VMEM slabs the kernel expects."""
    wproj = np.asarray(p["wproj"])          # (NL, D, 1, K)
    wcomp = np.asarray(p["wcomp"])[:, 0, :, 0]   # (NL, D)
    wskip = np.asarray(p["wskip"])[:, 0, :, 0]   # (NL, D)

    # convm[li]: (L, D*L) — pre[b, d*L + t] = sum_j wproj[d, j] * x_pad[b, t + j*dil]
    # with x_pad[u] = x[max(u - pad, 0)]  (left ReplicationPad1d of width pad).
    convm = np.zeros((N_LAYERS, L, DL), np.float32)
    # convr[li, 0/1]: (D*L, L) — 1x1 conv_compress / skip_conv channel reductions.
    convr = np.zeros((N_LAYERS, 2, DL, L), np.float32)
    for li in range(N_LAYERS):
        k, dil = KERNELS[li], DILATIONS[li]
        pad = dil * (k - 1)
        for d in range(D):
            for j in range(k):
                w = wproj[li, d, 0, j]
                for t in range(L):
                    src = max(t + j * dil - pad, 0)
                    convm[li, src, d * L + t] += w
            for t in range(L):
                convr[li, 0, d * L + t, t] = wcomp[li, d]
                convr[li, 1, d * L + t, t] = wskip[li, d]

    # head slab: (HEAD_ROWS, D_MODEL) f32, 8-aligned weight sections.
    head = np.zeros((HEAD_ROWS, D_MODEL), np.float32)
    head[ROW_WCE:ROW_WCE + L, :] = np.asarray(p["wce"]).T             # conv_output_embed W^T
    head[ROW_WPE:ROW_WPE + PORT_DIM, :] = np.asarray(p["wpe"]).T      # port_embed W^T (padded)
    head[ROW_BCE, :] = np.asarray(p["bce"])
    head[ROW_BPE, :] = np.asarray(p["bpe"])
    head[ROW_WOUT:ROW_WOUT + D_MODEL, :N_OUT] = np.asarray(p["wout"]).T  # head W^T (lane padded)
    head[ROW_BOUT, :N_OUT] = np.asarray(p["bout"])
    return jnp.asarray(convm), jnp.asarray(convr), jnp.asarray(head)


# ---------------------------- pure-JAX reference ------------------------------
def reference_forward(p, price, port):
    prec = jax.lax.Precision.HIGHEST   # keep the reference in true f32 on TPU
    x = price[:, :, 0].astype(jnp.float32)
    B, Lr = x.shape
    wproj = p["wproj"][:, :, 0, :]     # (NL, D, K)
    wcomp = p["wcomp"][:, 0, :, 0]     # (NL, D)
    wskip = p["wskip"][:, 0, :, 0]
    skip = jnp.zeros_like(x)
    for li in range(N_LAYERS):
        k, dil = KERNELS[li], DILATIONS[li]
        pad = dil * (k - 1)
        x_pad = jnp.concatenate([jnp.broadcast_to(x[:, :1], (B, pad)), x], axis=1)
        taps = jnp.stack([x_pad[:, j * dil: j * dil + Lr] for j in range(k)], axis=0)
        latent = _gelu_ref(jnp.einsum("dj,jbl->dbl", wproj[li], taps, precision=prec))
        x = x + jnp.einsum("d,dbl->bl", wcomp[li], latent, precision=prec)
        skip = skip + jnp.einsum("d,dbl->bl", wskip[li], latent, precision=prec)
    out = _gelu_ref(skip)
    price_emb = jnp.dot(out, p["wce"].T, precision=prec) + p["bce"]
    port_emb = jnp.dot(port.astype(jnp.float32), p["wpe"].T, precision=prec) + p["bpe"]
    h = _gelu_ref(price_emb * port_emb)
    q = jnp.dot(h, p["wout"].T, precision=prec) + p["bout"]
    return q.reshape(B, *OUTPUT_SHAPE)


def _check(params, convm, convr, head, batch, key):
    kx, kp = jax.random.split(key)
    price = jax.random.normal(kx, (batch, INPUT_LENGTH, INPUT_DIM), jnp.float32)
    portfolio = jax.random.normal(kp, (batch, PORT_DIM), jnp.float32)
    q = jax.block_until_ready(seriesnet_q_forward(convm, convr, head, price, portfolio))
    q_ref = jax.block_until_ready(reference_forward(params, price, portfolio))
    assert q.shape == (batch, N_ASSETS, N_ACTIONS)
    # Tolerance covers the kernel's EUP approx-reciprocal in GELU and MXU f32
    # rounding vs. the exact-divide / HIGHEST-precision reference.
    np.testing.assert_allclose(np.asarray(q), np.asarray(q_ref), rtol=2e-4, atol=2e-5)


if __name__ == "__main__":
    key = jax.random.PRNGKey(0)
    kp, kd1, kd2 = jax.random.split(key, 3)
    params = init_params(kp)
    convm, convr, head = pack_params(params)

    _check(params, convm, convr, head, BATCH, kd1)   # small batch (single grid step)
    _check(params, convm, convr, head, 64, kd2)      # larger batch (exercises tiling path)
    print("KERNEL_OK")
</pallas_src>

<mosaic_0001>
module attributes {stable_mosaic.version = 11 : i64} {
  func.func @seriesnet_kernel(%arg0: i32, %arg1: memref<2x32xf32, #tpu.memory_space<vmem>>, %arg2: memref<2x8xf32, #tpu.memory_space<vmem>>, %arg3: memref<3x32x256xf32, #tpu.memory_space<vmem>>, %arg4: memref<3x2x256x32xf32, #tpu.memory_space<vmem>>, %arg5: memref<88x32xf32, #tpu.memory_space<vmem>>, %arg6: memref<2x32xf32, #tpu.memory_space<vmem>>) attributes {dimension_semantics = [#tpu.dimension_semantics<parallel>], iteration_bounds = array<i64: 1>, scalar_prefetch = 0 : i64, scratch_operands = 0 : i64, tpu.core_type = #tpu.core_type<tc>, window_params = [{transform_indices = @transform_0, window_bounds = array<i64: 2, 32>}, {transform_indices = @transform_1, window_bounds = array<i64: 2, 8>}, {pipeline_mode = #tpu.pipeline_mode<synchronous>, transform_indices = @transform_2, window_bounds = array<i64: 3, 32, 256>}, {pipeline_mode = #tpu.pipeline_mode<synchronous>, transform_indices = @transform_3, window_bounds = array<i64: 3, 2, 256, 32>}, {pipeline_mode = #tpu.pipeline_mode<synchronous>, transform_indices = @transform_4, window_bounds = array<i64: 88, 32>}, {transform_indices = @transform_5, window_bounds = array<i64: 2, 32>}]} {
    %c0 = arith.constant 0 : index
    %c0_0 = arith.constant 0 : index
    %0 = vector.load %arg1[%c0, %c0_0] : memref<2x32xf32, #tpu.memory_space<vmem>>, vector<2x32xf32>
    %cst = arith.constant 0.000000e+00 : f32
    %1 = vector.broadcast %cst : f32 to vector<2x32xf32>
    %c0_1 = arith.constant 0 : index
    %c0_2 = arith.constant 0 : index
    %c0_3 = arith.constant 0 : index
    %2 = vector.load %arg3[%c0_1, %c0_2, %c0_3] : memref<3x32x256xf32, #tpu.memory_space<vmem>>, vector<1x32x256xf32>
    %3 = vector.shape_cast %2 : vector<1x32x256xf32> to vector<32x256xf32>
    %cst_4 = arith.constant dense<0.000000e+00> : vector<2x256xf32>
    %4 = tpu.matmul %0, %3, %cst_4 {dimension_numbers = #tpu.dot_dimension_numbers<[1], [0], [0], [1], [0, 0, 1, 1], [], []>} : vector<2x32xf32>, vector<32x256xf32>, vector<2x256xf32> -> vector<2x256xf32>
    %cst_5 = arith.constant 0.707106769 : f32
    %5 = vector.broadcast %cst_5 : f32 to vector<2x256xf32>
    %6 = arith.mulf %4, %5 : vector<2x256xf32>
    %7 = math.absf %6 : vector<2x256xf32>
    %cst_6 = arith.constant 0.327591091 : f32
    %8 = vector.broadcast %cst_6 : f32 to vector<2x256xf32>
    %9 = arith.mulf %8, %7 : vector<2x256xf32>
    %cst_7 = arith.constant 1.000000e+00 : f32
    %10 = vector.broadcast %cst_7 : f32 to vector<2x256xf32>
    %11 = arith.addf %10, %9 : vector<2x256xf32>
    %12 = tpu.reciprocal %11 {approx = true} : vector<2x256xf32> -> vector<2x256xf32>
    %cst_8 = arith.constant 1.06140542 : f32
    %13 = vector.broadcast %cst_8 : f32 to vector<2x256xf32>
    %14 = arith.mulf %13, %12 : vector<2x256xf32>
    %cst_9 = arith.constant -1.45315206 : f32
    %15 = vector.broadcast %cst_9 : f32 to vector<2x256xf32>
    %16 = arith.addf %14, %15 : vector<2x256xf32>
    %17 = arith.mulf %16, %12 : vector<2x256xf32>
    %cst_10 = arith.constant 1.42141378 : f32
    %18 = vector.broadcast %cst_10 : f32 to vector<2x256xf32>
    %19 = arith.addf %17, %18 : vector<2x256xf32>
    %20 = arith.mulf %19, %12 : vector<2x256xf32>
    %cst_11 = arith.constant -0.284496725 : f32
    %21 = vector.broadcast %cst_11 : f32 to vector<2x256xf32>
    %22 = arith.addf %20, %21 : vector<2x256xf32>
    %23 = arith.mulf %22, %12 : vector<2x256xf32>
    %cst_12 = arith.constant 0.254829586 : f32
    %24 = vector.broadcast %cst_12 : f32 to vector<2x256xf32>
    %25 = arith.addf %23, %24 : vector<2x256xf32>
    %26 = arith.mulf %25, %12 : vector<2x256xf32>
    %cst_13 = arith.constant 0.000000e+00 : f32
    %27 = vector.broadcast %cst_13 : f32 to vector<2x256xf32>
    %28 = arith.subf %27, %7 : vector<2x256xf32>
    %29 = arith.mulf %28, %7 : vector<2x256xf32>
    %30 = math.exp %29 : vector<2x256xf32>
    %31 = arith.mulf %26, %30 : vector<2x256xf32>
    %cst_14 = arith.constant 1.000000e+00 : f32
    %32 = vector.broadcast %cst_14 : f32 to vector<2x256xf32>
    %33 = arith.subf %32, %31 : vector<2x256xf32>
    %cst_15 = arith.constant 0.000000e+00 : f32
    %34 = vector.broadcast %cst_15 : f32 to vector<2x256xf32>
    %35 = arith.cmpf oge, %6, %34 : vector<2x256xf32>
    %cst_16 = arith.constant 0.000000e+00 : f32
    %36 = vector.broadcast %cst_16 : f32 to vector<2x256xf32>
    %37 = arith.subf %36, %33 : vector<2x256xf32>
    %38 = arith.select %35, %33, %37 : vector<2x256xi1>, vector<2x256xf32>
    %cst_17 = arith.constant 5.000000e-01 : f32
    %39 = vector.broadcast %cst_17 : f32 to vector<2x256xf32>
    %40 = arith.mulf %39, %4 : vector<2x256xf32>
    %cst_18 = arith.constant 1.000000e+00 : f32
    %41 = vector.broadcast %cst_18 : f32 to vector<2x256xf32>
    %42 = arith.addf %41, %38 : vector<2x256xf32>
    %43 = arith.mulf %40, %42 : vector<2x256xf32>
    %c0_19 = arith.constant 0 : index
    %c0_20 = arith.constant 0 : index
    %c0_21 = arith.constant 0 : index
    %c0_22 = arith.constant 0 : index
    %44 = vector.load %arg4[%c0_19, %c0_20, %c0_21, %c0_22] : memref<3x2x256x32xf32, #tpu.memory_space<vmem>>, vector<1x1x256x32xf32>
    %45 = vector.shape_cast %44 : vector<1x1x256x32xf32> to vector<256x32xf32>
    %cst_23 = arith.constant dense<0.000000e+00> : vector<2x32xf32>
    %46 = tpu.matmul %43, %45, %cst_23 {dimension_numbers = #tpu.dot_dimension_numbers<[1], [0], [0], [1], [0, 0, 1, 1], [], []>} : vector<2x256xf32>, vector<256x32xf32>, vector<2x32xf32> -> vector<2x32xf32>
    %47 = arith.addf %0, %46 : vector<2x32xf32>
    %c0_24 = arith.constant 0 : index
    %c1 = arith.constant 1 : index
    %c0_25 = arith.constant 0 : index
    %c0_26 = arith.constant 0 : index
    %48 = vector.load %arg4[%c0_24, %c1, %c0_25, %c0_26] : memref<3x2x256x32xf32, #tpu.memory_space<vmem>>, vector<1x1x256x32xf32>
    %49 = vector.shape_cast %48 : vector<1x1x256x32xf32> to vector<256x32xf32>
    %cst_27 = arith.constant dense<0.000000e+00> : vector<2x32xf32>
    %50 = tpu.matmul %43, %49, %cst_27 {dimension_numbers = #tpu.dot_dimension_numbers<[1], [0], [0], [1], [0, 0, 1, 1], [], []>} : vector<2x256xf32>, vector<256x32xf32>, vector<2x32xf32> -> vector<2x32xf32>
    %51 = arith.addf %1, %50 : vector<2x32xf32>
    %c1_28 = arith.constant 1 : index
    %c0_29 = arith.constant 0 : index
    %c0_30 = arith.constant 0 : index
    %52 = vector.load %arg3[%c1_28, %c0_29, %c0_30] : memref<3x32x256xf32, #tpu.memory_space<vmem>>, vector<1x32x256xf32>
    %53 = vector.shape_cast %52 : vector<1x32x256xf32> to vector<32x256xf32>
    %cst_31 = arith.constant dense<0.000000e+00> : vector<2x256xf32>
    %54 = tpu.matmul %47, %53, %cst_31 {dimension_numbers = #tpu.dot_dimension_numbers<[1], [0], [0], [1], [0, 0, 1, 1], [], []>} : vector<2x32xf32>, vector<32x256xf32>, vector<2x256xf32> -> vector<2x256xf32>
    %cst_32 = arith.constant 0.707106769 : f32
    %55 = vector.broadcast %cst_32 : f32 to vector<2x256xf32>
    %56 = arith.mulf %54, %55 : vector<2x256xf32>
    %57 = math.absf %56 : vector<2x256xf32>
    %cst_33 = arith.constant 0.327591091 : f32
    %58 = vector.broadcast %cst_33 : f32 to vector<2x256xf32>
    %59 = arith.mulf %58, %57 : vector<2x256xf32>
    %cst_34 = arith.constant 1.000000e+00 : f32
    %60 = vector.broadcast %cst_34 : f32 to vector<2x256xf32>
    %61 = arith.addf %60, %59 : vector<2x256xf32>
    %62 = tpu.reciprocal %61 {approx = true} : vector<2x256xf32> -> vector<2x256xf32>
    %cst_35 = arith.constant 1.06140542 : f32
    %63 = vector.broadcast %cst_35 : f32 to vector<2x256xf32>
    %64 = arith.mulf %63, %62 : vector<2x256xf32>
    %cst_36 = arith.constant -1.45315206 : f32
    %65 = vector.broadcast %cst_36 : f32 to vector<2x256xf32>
    %66 = arith.addf %64, %65 : vector<2x256xf32>
    %67 = arith.mulf %66, %62 : vector<2x256xf32>
    %cst_37 = arith.constant 1.42141378 : f32
    %68 = vector.broadcast %cst_37 : f32 to vector<2x256xf32>
    %69 = arith.addf %67, %68 : vector<2x256xf32>
    %70 = arith.mulf %69, %62 : vector<2x256xf32>
    %cst_38 = arith.constant -0.284496725 : f32
    %71 = vector.broadcast %cst_38 : f32 to vector<2x256xf32>
    %72 = arith.addf %70, %71 : vector<2x256xf32>
    %73 = arith.mulf %72, %62 : vector<2x256xf32>
    %cst_39 = arith.constant 0.254829586 : f32
    %74 = vector.broadcast %cst_39 : f32 to vector<2x256xf32>
    %75 = arith.addf %73, %74 : vector<2x256xf32>
    %76 = arith.mulf %75, %62 : vector<2x256xf32>
    %cst_40 = arith.constant 0.000000e+00 : f32
    %77 = vector.broadcast %cst_40 : f32 to vector<2x256xf32>
    %78 = arith.subf %77, %57 : vector<2x256xf32>
    %79 = arith.mulf %78, %57 : vector<2x256xf32>
    %80 = math.exp %79 : vector<2x256xf32>
    %81 = arith.mulf %76, %80 : vector<2x256xf32>
    %cst_41 = arith.constant 1.000000e+00 : f32
    %82 = vector.broadcast %cst_41 : f32 to vector<2x256xf32>
    %83 = arith.subf %82, %81 : vector<2x256xf32>
    %cst_42 = arith.constant 0.000000e+00 : f32
    %84 = vector.broadcast %cst_42 : f32 to vector<2x256xf32>
    %85 = arith.cmpf oge, %56, %84 : vector<2x256xf32>
    %cst_43 = arith.constant 0.000000e+00 : f32
    %86 = vector.broadcast %cst_43 : f32 to vector<2x256xf32>
    %87 = arith.subf %86, %83 : vector<2x256xf32>
    %88 = arith.select %85, %83, %87 : vector<2x256xi1>, vector<2x256xf32>
    %cst_44 = arith.constant 5.000000e-01 : f32
    %89 = vector.broadcast %cst_44 : f32 to vector<2x256xf32>
    %90 = arith.mulf %89, %54 : vector<2x256xf32>
    %cst_45 = arith.constant 1.000000e+00 : f32
    %91 = vector.broadcast %cst_45 : f32 to vector<2x256xf32>
    %92 = arith.addf %91, %88 : vector<2x256xf32>
    %93 = arith.mulf %90, %92 : vector<2x256xf32>
    %c1_46 = arith.constant 1 : index
    %c0_47 = arith.constant 0 : index
    %c0_48 = arith.constant 0 : index
    %c0_49 = arith.constant 0 : index
    %94 = vector.load %arg4[%c1_46, %c0_47, %c0_48, %c0_49] : memref<3x2x256x32xf32, #tpu.memory_space<vmem>>, vector<1x1x256x32xf32>
    %95 = vector.shape_cast %94 : vector<1x1x256x32xf32> to vector<256x32xf32>
    %cst_50 = arith.constant dense<0.000000e+00> : vector<2x32xf32>
    %96 = tpu.matmul %93, %95, %cst_50 {dimension_numbers = #tpu.dot_dimension_numbers<[1], [0], [0], [1], [0, 0, 1, 1], [], []>} : vector<2x256xf32>, vector<256x32xf32>, vector<2x32xf32> -> vector<2x32xf32>
    %97 = arith.addf %47, %96 : vector<2x32xf32>
    %c1_51 = arith.constant 1 : index
    %c1_52 = arith.constant 1 : index
    %c0_53 = arith.constant 0 : index
    %c0_54 = arith.constant 0 : index
    %98 = vector.load %arg4[%c1_51, %c1_52, %c0_53, %c0_54] : memref<3x2x256x32xf32, #tpu.memory_space<vmem>>, vector<1x1x256x32xf32>
    %99 = vector.shape_cast %98 : vector<1x1x256x32xf32> to vector<256x32xf32>
    %cst_55 = arith.constant dense<0.000000e+00> : vector<2x32xf32>
    %100 = tpu.matmul %93, %99, %cst_55 {dimension_numbers = #tpu.dot_dimension_numbers<[1], [0], [0], [1], [0, 0, 1, 1], [], []>} : vector<2x256xf32>, vector<256x32xf32>, vector<2x32xf32> -> vector<2x32xf32>
    %101 = arith.addf %51, %100 : vector<2x32xf32>
    %c2 = arith.constant 2 : index
    %c0_56 = arith.constant 0 : index
    %c0_57 = arith.constant 0 : index
    %102 = vector.load %arg3[%c2, %c0_56, %c0_57] : memref<3x32x256xf32, #tpu.memory_space<vmem>>, vector<1x32x256xf32>
    %103 = vector.shape_cast %102 : vector<1x32x256xf32> to vector<32x256xf32>
    %cst_58 = arith.constant dense<0.000000e+00> : vector<2x256xf32>
    %104 = tpu.matmul %97, %103, %cst_58 {dimension_numbers = #tpu.dot_dimension_numbers<[1], [0], [0], [1], [0, 0, 1, 1], [], []>} : vector<2x32xf32>, vector<32x256xf32>, vector<2x256xf32> -> vector<2x256xf32>
    %cst_59 = arith.constant 0.707106769 : f32
    %105 = vector.broadcast %cst_59 : f32 to vector<2x256xf32>
    %106 = arith.mulf %104, %105 : vector<2x256xf32>
    %107 = math.absf %106 : vector<2x256xf32>
    %cst_60 = arith.constant 0.327591091 : f32
    %108 = vector.broadcast %cst_60 : f32 to vector<2x256xf32>
    %109 = arith.mulf %108, %107 : vector<2x256xf32>
    %cst_61 = arith.constant 1.000000e+00 : f32
    %110 = vector.broadcast %cst_61 : f32 to vector<2x256xf32>
    %111 = arith.addf %110, %109 : vector<2x256xf32>
    %112 = tpu.reciprocal %111 {approx = true} : vector<2x256xf32> -> vector<2x256xf32>
    %cst_62 = arith.constant 1.06140542 : f32
    %113 = vector.broadcast %cst_62 : f32 to vector<2x256xf32>
    %114 = arith.mulf %113, %112 : vector<2x256xf32>
    %cst_63 = arith.constant -1.45315206 : f32
    %115 = vector.broadcast %cst_63 : f32 to vector<2x256xf32>
    %116 = arith.addf %114, %115 : vector<2x256xf32>
    %117 = arith.mulf %116, %112 : vector<2x256xf32>
    %cst_64 = arith.constant 1.42141378 : f32
    %118 = vector.broadcast %cst_64 : f32 to vector<2x256xf32>
    %119 = arith.addf %117, %118 : vector<2x256xf32>
    %120 = arith.mulf %119, %112 : vector<2x256xf32>
    %cst_65 = arith.constant -0.284496725 : f32
    %121 = vector.broadcast %cst_65 : f32 to vector<2x256xf32>
    %122 = arith.addf %120, %121 : vector<2x256xf32>
    %123 = arith.mulf %122, %112 : vector<2x256xf32>
    %cst_66 = arith.constant 0.254829586 : f32
    %124 = vector.broadcast %cst_66 : f32 to vector<2x256xf32>
    %125 = arith.addf %123, %124 : vector<2x256xf32>
    %126 = arith.mulf %125, %112 : vector<2x256xf32>
    %cst_67 = arith.constant 0.000000e+00 : f32
    %127 = vector.broadcast %cst_67 : f32 to vector<2x256xf32>
    %128 = arith.subf %127, %107 : vector<2x256xf32>
    %129 = arith.mulf %128, %107 : vector<2x256xf32>
    %130 = math.exp %129 : vector<2x256xf32>
    %131 = arith.mulf %126, %130 : vector<2x256xf32>
    %cst_68 = arith.constant 1.000000e+00 : f32
    %132 = vector.broadcast %cst_68 : f32 to vector<2x256xf32>
    %133 = arith.subf %132, %131 : vector<2x256xf32>
    %cst_69 = arith.constant 0.000000e+00 : f32
    %134 = vector.broadcast %cst_69 : f32 to vector<2x256xf32>
    %135 = arith.cmpf oge, %106, %134 : vector<2x256xf32>
    %cst_70 = arith.constant 0.000000e+00 : f32
    %136 = vector.broadcast %cst_70 : f32 to vector<2x256xf32>
    %137 = arith.subf %136, %133 : vector<2x256xf32>
    %138 = arith.select %135, %133, %137 : vector<2x256xi1>, vector<2x256xf32>
    %cst_71 = arith.constant 5.000000e-01 : f32
    %139 = vector.broadcast %cst_71 : f32 to vector<2x256xf32>
    %140 = arith.mulf %139, %104 : vector<2x256xf32>
    %cst_72 = arith.constant 1.000000e+00 : f32
    %141 = vector.broadcast %cst_72 : f32 to vector<2x256xf32>
    %142 = arith.addf %141, %138 : vector<2x256xf32>
    %143 = arith.mulf %140, %142 : vector<2x256xf32>
    %c2_73 = arith.constant 2 : index
    %c1_74 = arith.constant 1 : index
    %c0_75 = arith.constant 0 : index
    %c0_76 = arith.constant 0 : index
    %144 = vector.load %arg4[%c2_73, %c1_74, %c0_75, %c0_76] : memref<3x2x256x32xf32, #tpu.memory_space<vmem>>, vector<1x1x256x32xf32>
    %145 = vector.shape_cast %144 : vector<1x1x256x32xf32> to vector<256x32xf32>
    %cst_77 = arith.constant dense<0.000000e+00> : vector<2x32xf32>
    %146 = tpu.matmul %143, %145, %cst_77 {dimension_numbers = #tpu.dot_dimension_numbers<[1], [0], [0], [1], [0, 0, 1, 1], [], []>} : vector<2x256xf32>, vector<256x32xf32>, vector<2x32xf32> -> vector<2x32xf32>
    %147 = arith.addf %101, %146 : vector<2x32xf32>
    %cst_78 = arith.constant 0.707106769 : f32
    %148 = vector.broadcast %cst_78 : f32 to vector<2x32xf32>
    %149 = arith.mulf %147, %148 : vector<2x32xf32>
    %150 = math.absf %149 : vector<2x32xf32>
    %cst_79 = arith.constant 0.327591091 : f32
    %151 = vector.broadcast %cst_79 : f32 to vector<2x32xf32>
    %152 = arith.mulf %151, %150 : vector<2x32xf32>
    %cst_80 = arith.constant 1.000000e+00 : f32
    %153 = vector.broadcast %cst_80 : f32 to vector<2x32xf32>
    %154 = arith.addf %153, %152 : vector<2x32xf32>
    %155 = tpu.reciprocal %154 {approx = true} : vector<2x32xf32> -> vector<2x32xf32>
    %cst_81 = arith.constant 1.06140542 : f32
    %156 = vector.broadcast %cst_81 : f32 to vector<2x32xf32>
    %157 = arith.mulf %156, %155 : vector<2x32xf32>
    %cst_82 = arith.constant -1.45315206 : f32
    %158 = vector.broadcast %cst_82 : f32 to vector<2x32xf32>
    %159 = arith.addf %157, %158 : vector<2x32xf32>
    %160 = arith.mulf %159, %155 : vector<2x32xf32>
    %cst_83 = arith.constant 1.42141378 : f32
    %161 = vector.broadcast %cst_83 : f32 to vector<2x32xf32>
    %162 = arith.addf %160, %161 : vector<2x32xf32>
    %163 = arith.mulf %162, %155 : vector<2x32xf32>
    %cst_84 = arith.constant -0.284496725 : f32
    %164 = vector.broadcast %cst_84 : f32 to vector<2x32xf32>
    %165 = arith.addf %163, %164 : vector<2x32xf32>
    %166 = arith.mulf %165, %155 : vector<2x32xf32>
    %cst_85 = arith.constant 0.254829586 : f32
    %167 = vector.broadcast %cst_85 : f32 to vector<2x32xf32>
    %168 = arith.addf %166, %167 : vector<2x32xf32>
    %169 = arith.mulf %168, %155 : vector<2x32xf32>
    %cst_86 = arith.constant 0.000000e+00 : f32
    %170 = vector.broadcast %cst_86 : f32 to vector<2x32xf32>
    %171 = arith.subf %170, %150 : vector<2x32xf32>
    %172 = arith.mulf %171, %150 : vector<2x32xf32>
    %173 = math.exp %172 : vector<2x32xf32>
    %174 = arith.mulf %169, %173 : vector<2x32xf32>
    %cst_87 = arith.constant 1.000000e+00 : f32
    %175 = vector.broadcast %cst_87 : f32 to vector<2x32xf32>
    %176 = arith.subf %175, %174 : vector<2x32xf32>
    %cst_88 = arith.constant 0.000000e+00 : f32
    %177 = vector.broadcast %cst_88 : f32 to vector<2x32xf32>
    %178 = arith.cmpf oge, %149, %177 : vector<2x32xf32>
    %cst_89 = arith.constant 0.000000e+00 : f32
    %179 = vector.broadcast %cst_89 : f32 to vector<2x32xf32>
    %180 = arith.subf %179, %176 : vector<2x32xf32>
    %181 = arith.select %178, %176, %180 : vector<2x32xi1>, vector<2x32xf32>
    %cst_90 = arith.constant 5.000000e-01 : f32
    %182 = vector.broadcast %cst_90 : f32 to vector<2x32xf32>
    %183 = arith.mulf %182, %147 : vector<2x32xf32>
    %cst_91 = arith.constant 1.000000e+00 : f32
    %184 = vector.broadcast %cst_91 : f32 to vector<2x32xf32>
    %185 = arith.addf %184, %181 : vector<2x32xf32>
    %186 = arith.mulf %183, %185 : vector<2x32xf32>
    %c0_92 = arith.constant 0 : index
    %c0_93 = arith.constant 0 : index
    %187 = vector.load %arg2[%c0_92, %c0_93] : memref<2x8xf32, #tpu.memory_space<vmem>>, vector<2x8xf32>
    %c0_94 = arith.constant 0 : index
    %c0_95 = arith.constant 0 : index
    %188 = vector.load %arg5[%c0_94, %c0_95] : memref<88x32xf32, #tpu.memory_space<vmem>>, vector<32x32xf32>
    %c32 = arith.constant 32 : index
    %c0_96 = arith.constant 0 : index
    %189 = vector.load %arg5[%c32, %c0_96] : memref<88x32xf32, #tpu.memory_space<vmem>>, vector<8x32xf32>
    %c40 = arith.constant 40 : index
    %c0_97 = arith.constant 0 : index
    %190 = vector.load %arg5[%c40, %c0_97] : memref<88x32xf32, #tpu.memory_space<vmem>>, vector<1x32xf32>
    %c41 = arith.constant 41 : index
    %c0_98 = arith.constant 0 : index
    %191 = vector.load %arg5[%c41, %c0_98] : memref<88x32xf32, #tpu.memory_space<vmem>>, vector<1x32xf32>
    %cst_99 = arith.constant dense<0.000000e+00> : vector<2x32xf32>
    %192 = tpu.matmul %186, %188, %cst_99 {dimension_numbers = #tpu.dot_dimension_numbers<[1], [0], [0], [1], [0, 0, 1, 1], [], []>} : vector<2x32xf32>, vector<32x32xf32>, vector<2x32xf32> -> vector<2x32xf32>
    %193 = vector.broadcast %190 : vector<1x32xf32> to vector<2x32xf32>
    %194 = arith.addf %192, %193 : vector<2x32xf32>
    %cst_100 = arith.constant dense<0.000000e+00> : vector<2x32xf32>
    %195 = tpu.matmul %187, %189, %cst_100 {dimension_numbers = #tpu.dot_dimension_numbers<[1], [0], [0], [1], [0, 0, 1, 1], [], []>} : vector<2x8xf32>, vector<8x32xf32>, vector<2x32xf32> -> vector<2x32xf32>
    %196 = vector.broadcast %191 : vector<1x32xf32> to vector<2x32xf32>
    %197 = arith.addf %195, %196 : vector<2x32xf32>
    %198 = arith.mulf %194, %197 : vector<2x32xf32>
    %cst_101 = arith.constant 0.707106769 : f32
    %199 = vector.broadcast %cst_101 : f32 to vector<2x32xf32>
    %200 = arith.mulf %198, %199 : vector<2x32xf32>
    %201 = math.absf %200 : vector<2x32xf32>
    %cst_102 = arith.constant 0.327591091 : f32
    %202 = vector.broadcast %cst_102 : f32 to vector<2x32xf32>
    %203 = arith.mulf %202, %201 : vector<2x32xf32>
    %cst_103 = arith.constant 1.000000e+00 : f32
    %204 = vector.broadcast %cst_103 : f32 to vector<2x32xf32>
    %205 = arith.addf %204, %203 : vector<2x32xf32>
    %206 = tpu.reciprocal %205 {approx = true} : vector<2x32xf32> -> vector<2x32xf32>
    %cst_104 = arith.constant 1.06140542 : f32
    %207 = vector.broadcast %cst_104 : f32 to vector<2x32xf32>
    %208 = arith.mulf %207, %206 : vector<2x32xf32>
    %cst_105 = arith.constant -1.45315206 : f32
    %209 = vector.broadcast %cst_105 : f32 to vector<2x32xf32>
    %210 = arith.addf %208, %209 : vector<2x32xf32>
    %211 = arith.mulf %210, %206 : vector<2x32xf32>
    %cst_106 = arith.constant 1.42141378 : f32
    %212 = vector.broadcast %cst_106 : f32 to vector<2x32xf32>
    %213 = arith.addf %211, %212 : vector<2x32xf32>
    %214 = arith.mulf %213, %206 : vector<2x32xf32>
    %cst_107 = arith.constant -0.284496725 : f32
    %215 = vector.broadcast %cst_107 : f32 to vector<2x32xf32>
    %216 = arith.addf %214, %215 : vector<2x32xf32>
    %217 = arith.mulf %216, %206 : vector<2x32xf32>
    %cst_108 = arith.constant 0.254829586 : f32
    %218 = vector.broadcast %cst_108 : f32 to vector<2x32xf32>
    %219 = arith.addf %217, %218 : vector<2x32xf32>
    %220 = arith.mulf %219, %206 : vector<2x32xf32>
    %cst_109 = arith.constant 0.000000e+00 : f32
    %221 = vector.broadcast %cst_109 : f32 to vector<2x32xf32>
    %222 = arith.subf %221, %201 : vector<2x32xf32>
    %223 = arith.mulf %222, %201 : vector<2x32xf32>
    %224 = math.exp %223 : vector<2x32xf32>
    %225 = arith.mulf %220, %224 : vector<2x32xf32>
    %cst_110 = arith.constant 1.000000e+00 : f32
    %226 = vector.broadcast %cst_110 : f32 to vector<2x32xf32>
    %227 = arith.subf %226, %225 : vector<2x32xf32>
    %cst_111 = arith.constant 0.000000e+00 : f32
    %228 = vector.broadcast %cst_111 : f32 to vector<2x32xf32>
    %229 = arith.cmpf oge, %200, %228 : vector<2x32xf32>
    %cst_112 = arith.constant 0.000000e+00 : f32
    %230 = vector.broadcast %cst_112 : f32 to vector<2x32xf32>
    %231 = arith.subf %230, %227 : vector<2x32xf32>
    %232 = arith.select %229, %227, %231 : vector<2x32xi1>, vector<2x32xf32>
    %cst_113 = arith.constant 5.000000e-01 : f32
    %233 = vector.broadcast %cst_113 : f32 to vector<2x32xf32>
    %234 = arith.mulf %233, %198 : vector<2x32xf32>
    %cst_114 = arith.constant 1.000000e+00 : f32
    %235 = vector.broadcast %cst_114 : f32 to vector<2x32xf32>
    %236 = arith.addf %235, %232 : vector<2x32xf32>
    %237 = arith.mulf %234, %236 : vector<2x32xf32>
    %c48 = arith.constant 48 : index
    %c0_115 = arith.constant 0 : index
    %238 = vector.load %arg5[%c48, %c0_115] : memref<88x32xf32, #tpu.memory_space<vmem>>, vector<32x32xf32>
    %c80 = arith.constant 80 : index
    %c0_116 = arith.constant 0 : index
    %239 = vector.load %arg5[%c80, %c0_116] : memref<88x32xf32, #tpu.memory_space<vmem>>, vector<1x32xf32>
    %cst_117 = arith.constant dense<0.000000e+00> : vector<2x32xf32>
    %240 = tpu.matmul %237, %238, %cst_117 {dimension_numbers = #tpu.dot_dimension_numbers<[1], [0], [0], [1], [0, 0, 1, 1], [], []>} : vector<2x32xf32>, vector<32x32xf32>, vector<2x32xf32> -> vector<2x32xf32>
    %241 = vector.broadcast %239 : vector<1x32xf32> to vector<2x32xf32>
    %242 = arith.addf %240, %241 : vector<2x32xf32>
    %c0_118 = arith.constant 0 : index
    %c0_119 = arith.constant 0 : index
    %243 = vector.load %arg6[%c0_118, %c0_119] : memref<2x32xf32, #tpu.memory_space<vmem>>, vector<2x32xf32>
    tpu.vector_store %arg6[%c0_118, %c0_119], %242 {strides = array<i32>} : memref<2x32xf32, #tpu.memory_space<vmem>>, vector<2x32xf32>,
    return
  }
  func.func @transform_0(%arg0: i32) -> (i32, i32) {
    %c0_i32 = arith.constant 0 : i32
    %c0_i32_0 = arith.constant 0 : i32
    return %arg0, %c0_i32 : i32, i32
  }
  func.func @transform_1(%arg0: i32) -> (i32, i32) {
    %c0_i32 = arith.constant 0 : i32
    %c0_i32_0 = arith.constant 0 : i32
    return %arg0, %c0_i32 : i32, i32
  }
  func.func @transform_2(%arg0: i32) -> (i32, i32, i32) {
    %c0_i32 = arith.constant 0 : i32
    %c0_i32_0 = arith.constant 0 : i32
    %c0_i32_1 = arith.constant 0 : i32
    %c0_i32_2 = arith.constant 0 : i32
    return %c0_i32, %c0_i32_0, %c0_i32_1 : i32, i32, i32
  }
  func.func @transform_3(%arg0: i32) -> (i32, i32, i32, i32) {
    %c0_i32 = arith.constant 0 : i32
    %c0_i32_0 = arith.constant 0 : i32
    %c0_i32_1 = arith.constant 0 : i32
    %c0_i32_2 = arith.constant 0 : i32
    %c0_i32_3 = arith.constant 0 : i32
    return %c0_i32, %c0_i32_0, %c0_i32_1, %c0_i32_2 : i32, i32, i32, i32
  }
  func.func @transform_4(%arg0: i32) -> (i32, i32) {
    %c0_i32 = arith.constant 0 : i32
    %c0_i32_0 = arith.constant 0 : i32
    %c0_i32_1 = arith.constant 0 : i32
    return %c0_i32, %c0_i32_0 : i32, i32
  }
  func.func @transform_5(%arg0: i32) -> (i32, i32) {
    %c0_i32 = arith.constant 0 : i32
    %c0_i32_0 = arith.constant 0 : i32
    return %arg0, %c0_i32 : i32, i32
  }
}

</mosaic_0001>

<llo_original>
// kernel: tpu_custom_call.1
$region0: #{tpu_custom_call.1}
  #allocation0 [shape = 'u32[]', space=smem, size = 0x4, offset = 0x4, fixed_abs, tag = 'smem constant byte address 0x4 - core index']
  #allocation1 [shape = 'u32[144,128]{1,0:T(1,128)}', space=vmem, size = 0x12000, scoped, tag = 'internal scratch']
  %s0 = inlined_call_operand.vmem [shape: f32[2,32], index: 0, kind: input, shape index: {}]
  %s1 = inlined_call_operand.vmem [shape: f32[2,8], index: 1, kind: input, shape index: {}]
  %s2 = inlined_call_operand.vmem [shape: f32[3,32,256], index: 2, kind: input, shape index: {}]
  %s3 = inlined_call_operand.vmem [shape: f32[3,2,256,32], index: 3, kind: input, shape index: {}]
  %s4 = inlined_call_operand.vmem [shape: f32[88,32], index: 4, kind: input, shape index: {}]
  %s5 = inlined_call_operand.hbm [shape: f32[2,32], index: 5, kind: output, shape index: {}]
  %s6 = sld [smem:[#allocation0]]
  $region30: #{tpu_custom_call.1} parent=0
    _
  %s8 = ssub.s32 1, %s6
  %s9 = scalar_select 0, %s8, %s6
  $region1: #{tpu_custom_call.1} parent=0
    #allocation2 [shape = 'u8[1024]{0}', space=vmem, size = 0x400, scoped, tag = 'output window, operand 0, single buffered']
    #allocation3 [shape = 's32[1]{0}', space=sflag, size = 0x4, scoped, tag = 'scoped memory for tpu_custom_call.1']
    %10 = vsyncpa [#allocation3], 0
    // Predicated region
    $region2: #{tpu_custom_call.1} parent=1 // pred_check
      _
    $region3: #{tpu_custom_call.1} parent=1 // pred_check_branch
      %12 = sbr.rel (0) target = $region5
    $region4: #{tpu_custom_call.1} parent=1 // pred_region
      _
    $region5: #{tpu_custom_call.1} parent=1 // pred_fallthru
      _
    // Predicated region
    $region6: #{tpu_custom_call.1} parent=1 // pred_check
      _
    $region7: #{tpu_custom_call.1} parent=1 // pred_check_branch
      %14 = sbr.rel (0) target = $region9
    $region8: #{tpu_custom_call.1} parent=1 // pred_region
      _
    $region9: #{tpu_custom_call.1} parent=1 // pred_fallthru
      _
    // Predicated region
    $region10: #{tpu_custom_call.1} parent=1 // pred_check
      _
    $region11: #{tpu_custom_call.1} parent=1 // pred_check_branch
      %16 = sbr.rel (0) target = $region13
    $region12: #{tpu_custom_call.1} parent=1 // pred_region
      _
    $region13: #{tpu_custom_call.1} parent=1 // pred_fallthru
      _
    // Predicated region
    $region14: #{tpu_custom_call.1} parent=1 // pred_check
      _
    $region15: #{tpu_custom_call.1} parent=1 // pred_check_branch
      %18 = sbr.rel (0) target = $region17
    $region16: #{tpu_custom_call.1} parent=1 // pred_region
      _
    $region17: #{tpu_custom_call.1} parent=1 // pred_fallthru
      _
    // Predicated region
    $region18: #{tpu_custom_call.1} parent=1 // pred_check
      _
    $region19: #{tpu_custom_call.1} parent=1 // pred_check_branch
      %20 = sbr.rel (0) target = $region21
    $region20: #{tpu_custom_call.1} parent=1 // pred_region
      _
    $region21: #{tpu_custom_call.1} parent=1 // pred_fallthru
      _
    %v21 = vld [vmem:[%s0] sm:$0x3]
    %v22 = vld [vmem:[%s2] sm:$0xff]
    %v23 = vld [vmem:[%s2 + $0x8] sm:$0xff]
    %v24 = vld [vmem:[%s2 + $0x10] sm:$0xff]
    %v25 = vld [vmem:[%s2 + $0x18] sm:$0xff]
    %v26 = vld [vmem:[%s2 + $0x20] sm:$0xff]
    %v27 = vld [vmem:[%s2 + $0x28] sm:$0xff]
    %v28 = vld [vmem:[%s2 + $0x30] sm:$0xff]
    %v29 = vld [vmem:[%s2 + $0x38] sm:$0xff]
    %vm30 = vcmask 261120
    %v32 = vsel %vm30, %v21, 0
    %34 = vmatprep.subr.mxu0 0.0
    %35 = vmatpush1.msra.mxu0 0.0
    %36 = vmatprep.subr.mxu0 0.0
    %37 = vmatpush1.msra.mxu0 0.0
    %38 = vmatprep.subr.mxu0 0.0
    %39 = vmatpush1.msra.mxu0 0.0
    %40 = vmatprep.subr.mxu0 0.0
    %41 = vmatpush1.msra.mxu0 0.0
    %42 = vmatprep.subr.mxu0 0.0
    %43 = vmatpush1.msra.mxu0 0.0
    %44 = vmatprep.subr.mxu0 0.0
    %45 = vmatpush1.msra.mxu0 0.0
    %46 = vmatprep.subr.mxu0 0.0
    %47 = vmatpush1.msra.mxu0 0.0
    %48 = vmatprep.subr.mxu0 0.0
    %49 = vmatpush1.msra.mxu0 0.0
    %50 = vmatprep.subr.mxu0 0.0
    %51 = vmatpush1.msra.mxu0 0.0
    %52 = vmatprep.subr.mxu0 0.0
    %53 = vmatpush1.msra.mxu0 0.0
    %54 = vmatprep.subr.mxu0 0.0
    %55 = vmatpush1.msra.mxu0 0.0
    %56 = vmatprep.subr.mxu0 0.0
    %57 = vmatpush1.msra.mxu0 0.0
    %58 = vmatprep.subr.mxu0 %v29
    %59 = vmatpush1.msra.mxu0 %v28
    %60 = vmatprep.subr.mxu0 %v27
    %61 = vmatpush1.msra.mxu0 %v26
    %62 = vmatprep.subr.mxu0 %v25
    %63 = vmatpush1.msra.mxu0 %v24
    %64 = vmatprep.subr.mxu0 %v23
    %65 = vmatpush1.msra.mxu0 %v22
    %66 = vmatprep.subr.mxu0 0.0
    %67 = vmatpush2.msra.mxu0 0.0
    %68 = vmatprep.subr.mxu0 0.0
    %69 = vmatpush2.msra.mxu0 0.0
    %70 = vmatprep.subr.mxu0 0.0
    %71 = vmatpush2.msra.mxu0 0.0
    %72 = vmatprep.subr.mxu0 0.0
    %73 = vmatpush2.msra.mxu0 0.0
    %74 = vmatprep.subr.mxu0 0.0
    %75 = vmatpush2.msra.mxu0 0.0
    %76 = vmatprep.subr.mxu0 0.0
    %77 = vmatpush2.msra.mxu0 0.0
    %78 = vmatprep.subr.mxu0 0.0
    %79 = vmatpush2.msra.mxu0 0.0
    %80 = vmatprep.subr.mxu0 0.0
    %81 = vmatpush2.msra.mxu0 0.0
    %82 = vmatprep.subr.mxu0 0.0
    %83 = vmatpush2.msra.mxu0 0.0
    %84 = vmatprep.subr.mxu0 0.0
    %85 = vmatpush2.msra.mxu0 0.0
    %86 = vmatprep.subr.mxu0 0.0
    %87 = vmatpush2.msra.mxu0 0.0
    %88 = vmatprep.subr.mxu0 0.0
    %89 = vmatpush2.msra.mxu0 0.0
    %90 = vmatprep.subr.mxu0 0.0
    %91 = vmatpush2.msra.mxu0 0.0
    %92 = vmatprep.subr.mxu0 0.0
    %93 = vmatpush2.msra.mxu0 0.0
    %94 = vmatprep.subr.mxu0 0.0
    %95 = vmatpush2.msra.mxu0 0.0
    %96 = vmatprep.subr.mxu0 0.0
    %97 = vmatpush2.msra.mxu0 0.0
    %98 = vmatprep.mubr.f32.mxu0 0.0
    %99 = vmatmul.mubr.f32.gmra.mxu0 %v32
    %v100 = vpop.f32.mrf.mxu0
    %v101 = vadd.f32 0.0, %v100
    %v102 = vpop.f32.mrf.mxu0
    %v103 = vadd.f32 0.0, %v102
    %104 = vdwg.mxu0
    %v105 = vmul.f32 %v101, 0.70710677
    %v106 = vmul.f32 %v103, 0.70710677
    %v107 = vand.u32 2147483647, %v105
    %v108 = vand.u32 2147483647, %v106
    %v109 = vmul.f32 %v107, 0.3275911
    %v110 = vmul.f32 %v108, 0.3275911
    %v111 = vadd.f32 %v109, 1.0
    %v112 = vadd.f32 %v110, 1.0
    %v113 = vrcp.pop %v111
    %v114 = vrcp.pop %v112
    %v115 = vmul.f32 %v113, 1.0614054
    %v116 = vmul.f32 %v114, 1.0614054
    %v117 = vadd.f32 %v115, -1.4531521
    %v118 = vadd.f32 %v116, -1.4531521
    %v119 = vmul.f32 %v117, %v113
    %v120 = vmul.f32 %v118, %v114
    %v121 = vadd.f32 %v119, 1.4214138
    %v122 = vadd.f32 %v120, 1.4214138
    %v123 = vmul.f32 %v121, %v113
    %v124 = vmul.f32 %v122, %v114
    %v125 = vadd.f32 %v123, -0.28449672
    %v126 = vadd.f32 %v124, -0.28449672
    %v127 = vmul.f32 %v125, %v113
    %v128 = vmul.f32 %v126, %v114
    %v129 = vadd.f32 %v127, 0.2548296
    %v130 = vadd.f32 %v128, 0.2548296
    %v131 = vmul.f32 %v129, %v113
    %v132 = vmul.f32 %v130, %v114
    %v133 = vsub.f32 0.0, %v107
    %v134 = vsub.f32 0.0, %v108
    %v135 = vmul.f32 %v133, %v107
    %v136 = vmul.f32 %v134, %v108
    %v137 = vmul.f32 %v135, 1.442695
    %v138 = vpow.pop %v137
    %v139 = vmul.f32 %v136, 1.442695
    %v140 = vpow.pop %v139
    %v141 = vmul.f32 %v131, %v138
    %v142 = vmul.f32 %v132, %v140
    %v143 = vsub.f32 1.0, %v141
    %v144 = vsub.f32 1.0, %v142
    %vm145 = vcmp.ge.f32.partialorder %v105, 0.0
    %vm146 = vcmp.ge.f32.partialorder %v106, 0.0
    %v147 = vsub.f32 0.0, %v143
    %v148 = vsub.f32 0.0, %v144
    %v149 = vsel %vm145, %v143, %v147
    %v150 = vsel %vm146, %v144, %v148
    %v151 = vmul.f32 %v101, 0.5
    %v152 = vmul.f32 %v103, 0.5
    %v153 = vadd.f32 %v149, 1.0
    %v154 = vadd.f32 %v150, 1.0
    %v155 = vmul.f32 %v151, %v153
    %v156 = vmul.f32 %v152, %v154
    %v157 = vld [vmem:[%s3] sm:$0xff]
    %v158 = vld [vmem:[%s3 + $0x8] sm:$0xff]
    %v159 = vld [vmem:[%s3 + $0x10] sm:$0xff]
    %v160 = vld [vmem:[%s3 + $0x18] sm:$0xff]
    %v161 = vld [vmem:[%s3 + $0x20] sm:$0xff]
    %v162 = vld [vmem:[%s3 + $0x28] sm:$0xff]
    %v163 = vld [vmem:[%s3 + $0x30] sm:$0xff]
    %v164 = vld [vmem:[%s3 + $0x38] sm:$0xff]
    %v165 = vld [vmem:[%s3 + $0x40] sm:$0xff]
    %v166 = vld [vmem:[%s3 + $0x48] sm:$0xff]
    %v167 = vld [vmem:[%s3 + $0x50] sm:$0xff]
    %v168 = vld [vmem:[%s3 + $0x58] sm:$0xff]
    %v169 = vld [vmem:[%s3 + $0x60] sm:$0xff]
    %v170 = vld [vmem:[%s3 + $0x68] sm:$0xff]
    %v171 = vld [vmem:[%s3 + $0x70] sm:$0xff]
    %v172 = vld [vmem:[%s3 + $0x78] sm:$0xff]
    %v173 = vld [vmem:[%s3 + $0x80] sm:$0xff]
    %v174 = vld [vmem:[%s3 + $0x88] sm:$0xff]
    %v175 = vld [vmem:[%s3 + $0x90] sm:$0xff]
    %v176 = vld [vmem:[%s3 + $0x98] sm:$0xff]
    %v177 = vld [vmem:[%s3 + $0xa0] sm:$0xff]
    %v178 = vld [vmem:[%s3 + $0xa8] sm:$0xff]
    %v179 = vld [vmem:[%s3 + $0xb0] sm:$0xff]
    %v180 = vld [vmem:[%s3 + $0xb8] sm:$0xff]
    %v181 = vld [vmem:[%s3 + $0xc0] sm:$0xff]
    %v182 = vld [vmem:[%s3 + $0xc8] sm:$0xff]
    %v183 = vld [vmem:[%s3 + $0xd0] sm:$0xff]
    %v184 = vld [vmem:[%s3 + $0xd8] sm:$0xff]
    %v185 = vld [vmem:[%s3 + $0xe0] sm:$0xff]
    %v186 = vld [vmem:[%s3 + $0xe8] sm:$0xff]
    %v187 = vld [vmem:[%s3 + $0xf0] sm:$0xff]
    %v188 = vld [vmem:[%s3 + $0xf8] sm:$0xff]
    %189 = vmatprep.subr.mxu0 0.0
    %190 = vmatpush1.msra.mxu0 %v172
    %191 = vmatprep.subr.mxu0 0.0
    %192 = vmatpush1.msra.mxu0 %v171
    %193 = vmatprep.subr.mxu0 0.0
    %194 = vmatpush1.msra.mxu0 %v170
    %195 = vmatprep.subr.mxu0 0.0
    %196 = vmatpush1.msra.mxu0 %v169
    %197 = vmatprep.subr.mxu0 0.0
    %198 = vmatpush1.msra.mxu0 %v168
    %199 = vmatprep.subr.mxu0 0.0
    %200 = vmatpush1.msra.mxu0 %v167
    %201 = vmatprep.subr.mxu0 0.0
    %202 = vmatpush1.msra.mxu0 %v166
    %203 = vmatprep.subr.mxu0 0.0
    %204 = vmatpush1.msra.mxu0 %v165
    %205 = vmatprep.subr.mxu0 0.0
    %206 = vmatpush1.msra.mxu0 %v164
    %207 = vmatprep.subr.mxu0 0.0
    %208 = vmatpush1.msra.mxu0 %v163
    %209 = vmatprep.subr.mxu0 0.0
    %210 = vmatpush1.msra.mxu0 %v162
    %211 = vmatprep.subr.mxu0 0.0
    %212 = vmatpush1.msra.mxu0 %v161
    %213 = vmatprep.subr.mxu0 0.0
    %214 = vmatpush1.msra.mxu0 %v160
    %215 = vmatprep.subr.mxu0 0.0
    %216 = vmatpush1.msra.mxu0 %v159
    %217 = vmatprep.subr.mxu0 0.0
    %218 = vmatpush1.msra.mxu0 %v158
    %219 = vmatprep.subr.mxu0 0.0
    %220 = vmatpush1.msra.mxu0 %v157
    %221 = vmatprep.subr.mxu0 0.0
    %222 = vmatpush2.msra.mxu0 %v188
    %223 = vmatprep.subr.mxu0 0.0
    %224 = vmatpush2.msra.mxu0 %v187
    %225 = vmatprep.subr.mxu0 0.0
    %226 = vmatpush2.msra.mxu0 %v186
    %227 = vmatprep.subr.mxu0 0.0
    %228 = vmatpush2.msra.mxu0 %v185
    %229 = vmatprep.subr.mxu0 0.0
    %230 = vmatpush2.msra.mxu0 %v184
    %231 = vmatprep.subr.mxu0 0.0
    %232 = vmatpush2.msra.mxu0 %v183
    %233 = vmatprep.subr.mxu0 0.0
    %234 = vmatpush2.msra.mxu0 %v182
    %235 = vmatprep.subr.mxu0 0.0
    %236 = vmatpush2.msra.mxu0 %v181
    %237 = vmatprep.subr.mxu0 0.0
    %238 = vmatpush2.msra.mxu0 %v180
    %239 = vmatprep.subr.mxu0 0.0
    %240 = vmatpush2.msra.mxu0 %v179
    %241 = vmatprep.subr.mxu0 0.0
    %242 = vmatpush2.msra.mxu0 %v178
    %243 = vmatprep.subr.mxu0 0.0
    %244 = vmatpush2.msra.mxu0 %v177
    %245 = vmatprep.subr.mxu0 0.0
    %246 = vmatpush2.msra.mxu0 %v176
    %247 = vmatprep.subr.mxu0 0.0
    %248 = vmatpush2.msra.mxu0 %v175
    %249 = vmatprep.subr.mxu0 0.0
    %250 = vmatpush2.msra.mxu0 %v174
    %251 = vmatprep.subr.mxu0 0.0
    %252 = vmatpush2.msra.mxu0 %v173
    %253 = vmatprep.mubr.f32.mxu0 %v156
    %254 = vmatmul.mubr.f32.gmra.mxu0 %v155
    %v255 = vpop.f32.mrf.mxu0
    %v256 = vadd.f32 0.0, %v255
    %v257 = vpop.f32.mrf.mxu0
    %258 = vdwg.mxu0
    %v259 = vadd.f32 %v21, %v256
    %s260 = scalar_lea.vmem %s3, 256
    %v261 = vld [vmem:[%s260] sm:$0xff]
    %v262 = vld [vmem:[%s260 + $0x8] sm:$0xff]
    %v263 = vld [vmem:[%s260 + $0x10] sm:$0xff]
    %v264 = vld [vmem:[%s260 + $0x18] sm:$0xff]
    %v265 = vld [vmem:[%s260 + $0x20] sm:$0xff]
    %v266 = vld [vmem:[%s260 + $0x28] sm:$0xff]
    %v267 = vld [vmem:[%s260 + $0x30] sm:$0xff]
    %v268 = vld [vmem:[%s260 + $0x38] sm:$0xff]
    %v269 = vld [vmem:[%s260 + $0x40] sm:$0xff]
    %v270 = vld [vmem:[%s260 + $0x48] sm:$0xff]
    %v271 = vld [vmem:[%s260 + $0x50] sm:$0xff]
    %v272 = vld [vmem:[%s260 + $0x58] sm:$0xff]
    %v273 = vld [vmem:[%s260 + $0x60] sm:$0xff]
    %v274 = vld [vmem:[%s260 + $0x68] sm:$0xff]
    %v275 = vld [vmem:[%s260 + $0x70] sm:$0xff]
    %v276 = vld [vmem:[%s260 + $0x78] sm:$0xff]
    %v277 = vld [vmem:[%s260 + $0x80] sm:$0xff]
    %v278 = vld [vmem:[%s260 + $0x88] sm:$0xff]
    %v279 = vld [vmem:[%s260 + $0x90] sm:$0xff]
    %v280 = vld [vmem:[%s260 + $0x98] sm:$0xff]
    %v281 = vld [vmem:[%s260 + $0xa0] sm:$0xff]
    %v282 = vld [vmem:[%s260 + $0xa8] sm:$0xff]
    %v283 = vld [vmem:[%s260 + $0xb0] sm:$0xff]
    %v284 = vld [vmem:[%s260 + $0xb8] sm:$0xff]
    %v285 = vld [vmem:[%s260 + $0xc0] sm:$0xff]
    %v286 = vld [vmem:[%s260 + $0xc8] sm:$0xff]
    %v287 = vld [vmem:[%s260 + $0xd0] sm:$0xff]
    %v288 = vld [vmem:[%s260 + $0xd8] sm:$0xff]
    %v289 = vld [vmem:[%s260 + $0xe0] sm:$0xff]
    %v290 = vld [vmem:[%s260 + $0xe8] sm:$0xff]
    %v291 = vld [vmem:[%s260 + $0xf0] sm:$0xff]
    %v292 = vld [vmem:[%s260 + $0xf8] sm:$0xff]
    %s293 = scalar_lea.vmem %s2, 64
    %v294 = vld [vmem:[%s293] sm:$0xff]
    %v295 = vld [vmem:[%s293 + $0x8] sm:$0xff]
    %v296 = vld [vmem:[%s293 + $0x10] sm:$0xff]
    %v297 = vld [vmem:[%s293 + $0x18] sm:$0xff]
    %v298 = vld [vmem:[%s293 + $0x20] sm:$0xff]
    %v299 = vld [vmem:[%s293 + $0x28] sm:$0xff]
    %v300 = vld [vmem:[%s293 + $0x30] sm:$0xff]
    %v301 = vld [vmem:[%s293 + $0x38] sm:$0xff]
    %v303 = vsel %vm30, %v259, 0
    %305 = vmatprep.subr.mxu0 0.0
    %306 = vmatpush1.msra.mxu0 0.0
    %307 = vmatprep.subr.mxu0 0.0
    %308 = vmatpush1.msra.mxu0 0.0
    %309 = vmatprep.subr.mxu0 0.0
    %310 = vmatpush1.msra.mxu0 0.0
    %311 = vmatprep.subr.mxu0 0.0
    %312 = vmatpush1.msra.mxu0 0.0
    %313 = vmatprep.subr.mxu0 0.0
    %314 = vmatpush1.msra.mxu0 0.0
    %315 = vmatprep.subr.mxu0 0.0
    %316 = vmatpush1.msra.mxu0 0.0
    %317 = vmatprep.subr.mxu0 0.0
    %318 = vmatpush1.msra.mxu0 0.0
    %319 = vmatprep.subr.mxu0 0.0
    %320 = vmatpush1.msra.mxu0 0.0
    %321 = vmatprep.subr.mxu0 0.0
    %322 = vmatpush1.msra.mxu0 0.0
    %323 = vmatprep.subr.mxu0 0.0
    %324 = vmatpush1.msra.mxu0 0.0
    %325 = vmatprep.subr.mxu0 0.0
    %326 = vmatpush1.msra.mxu0 0.0
    %327 = vmatprep.subr.mxu0 0.0
    %328 = vmatpush1.msra.mxu0 0.0
    %329 = vmatprep.subr.mxu0 %v301
    %330 = vmatpush1.msra.mxu0 %v300
    %331 = vmatprep.subr.mxu0 %v299
    %332 = vmatpush1.msra.mxu0 %v298
    %333 = vmatprep.subr.mxu0 %v297
    %334 = vmatpush1.msra.mxu0 %v296
    %335 = vmatprep.subr.mxu0 %v295
    %336 = vmatpush1.msra.mxu0 %v294
    %337 = vmatprep.subr.mxu0 0.0
    %338 = vmatpush2.msra.mxu0 0.0
    %339 = vmatprep.subr.mxu0 0.0
    %340 = vmatpush2.msra.mxu0 0.0
    %341 = vmatprep.subr.mxu0 0.0
    %342 = vmatpush2.msra.mxu0 0.0
    %343 = vmatprep.subr.mxu0 0.0
    %344 = vmatpush2.msra.mxu0 0.0
    %345 = vmatprep.subr.mxu0 0.0
    %346 = vmatpush2.msra.mxu0 0.0
    %347 = vmatprep.subr.mxu0 0.0
    %348 = vmatpush2.msra.mxu0 0.0
    %349 = vmatprep.subr.mxu0 0.0
    %350 = vmatpush2.msra.mxu0 0.0
    %351 = vmatprep.subr.mxu0 0.0
    %352 = vmatpush2.msra.mxu0 0.0
    %353 = vmatprep.subr.mxu0 0.0
    %354 = vmatpush2.msra.mxu0 0.0
    %355 = vmatprep.subr.mxu0 0.0
    %356 = vmatpush2.msra.mxu0 0.0
    %357 = vmatprep.subr.mxu0 0.0
    %358 = vmatpush2.msra.mxu0 0.0
    %359 = vmatprep.subr.mxu0 0.0
    %360 = vmatpush2.msra.mxu0 0.0
    %361 = vmatprep.subr.mxu0 0.0
    %362 = vmatpush2.msra.mxu0 0.0
    %363 = vmatprep.subr.mxu0 0.0
    %364 = vmatpush2.msra.mxu0 0.0
    %365 = vmatprep.subr.mxu0 0.0
    %366 = vmatpush2.msra.mxu0 0.0
    %367 = vmatprep.subr.mxu0 0.0
    %368 = vmatpush2.msra.mxu0 0.0
    %369 = vmatprep.mubr.f32.mxu0 0.0
    %370 = vmatmul.mubr.f32.gmra.mxu0 %v303
    %v371 = vpop.f32.mrf.mxu0
    %v372 = vadd.f32 0.0, %v371
    %v373 = vpop.f32.mrf.mxu0
    %v374 = vadd.f32 0.0, %v373
    %375 = vdwg.mxu0
    %v376 = vmul.f32 %v372, 0.70710677
    %v377 = vmul.f32 %v374, 0.70710677
    %v378 = vand.u32 2147483647, %v376
    %v379 = vand.u32 2147483647, %v377
    %v380 = vmul.f32 %v378, 0.3275911
    %v381 = vmul.f32 %v379, 0.3275911
    %v382 = vadd.f32 %v380, 1.0
    %v383 = vadd.f32 %v381, 1.0
    %v384 = vrcp.pop %v382
    %v385 = vrcp.pop %v383
    %v386 = vmul.f32 %v384, 1.0614054
    %v387 = vmul.f32 %v385, 1.0614054
    %v388 = vadd.f32 %v386, -1.4531521
    %v389 = vadd.f32 %v387, -1.4531521
    %v390 = vmul.f32 %v388, %v384
    %v391 = vmul.f32 %v389, %v385
    %v392 = vadd.f32 %v390, 1.4214138
    %v393 = vadd.f32 %v391, 1.4214138
    %v394 = vmul.f32 %v392, %v384
    %v395 = vmul.f32 %v393, %v385
    %v396 = vadd.f32 %v394, -0.28449672
    %v397 = vadd.f32 %v395, -0.28449672
    %v398 = vmul.f32 %v396, %v384
    %v399 = vmul.f32 %v397, %v385
    %v400 = vadd.f32 %v398, 0.2548296
    %v401 = vadd.f32 %v399, 0.2548296
    %v402 = vmul.f32 %v400, %v384
    %v403 = vmul.f32 %v401, %v385
    %v404 = vsub.f32 0.0, %v378
    %v405 = vsub.f32 0.0, %v379
    %v406 = vmul.f32 %v404, %v378
    %v407 = vmul.f32 %v405, %v379
    %v408 = vmul.f32 %v406, 1.442695
    %v409 = vpow.pop %v408
    %v410 = vmul.f32 %v407, 1.442695
    %v411 = vpow.pop %v410
    %v412 = vmul.f32 %v402, %v409
    %v413 = vmul.f32 %v403, %v411
    %v414 = vsub.f32 1.0, %v412
    %v415 = vsub.f32 1.0, %v413
    %vm416 = vcmp.ge.f32.partialorder %v376, 0.0
    %vm417 = vcmp.ge.f32.partialorder %v377, 0.0
    %v418 = vsub.f32 0.0, %v414
    %v419 = vsub.f32 0.0, %v415
    %v420 = vsel %vm416, %v414, %v418
    %v421 = vsel %vm417, %v415, %v419
    %v422 = vmul.f32 %v372, 0.5
    %v423 = vmul.f32 %v374, 0.5
    %v424 = vadd.f32 %v420, 1.0
    %v425 = vadd.f32 %v421, 1.0
    %v426 = vmul.f32 %v422, %v424
    %v427 = vmul.f32 %v423, %v425
    %s428 = scalar_lea.vmem %s3, 512
    %v429 = vld [vmem:[%s428] sm:$0xff]
    %v430 = vld [vmem:[%s428 + $0x8] sm:$0xff]
    %v431 = vld [vmem:[%s428 + $0x10] sm:$0xff]
    %v432 = vld [vmem:[%s428 + $0x18] sm:$0xff]
    %v433 = vld [vmem:[%s428 + $0x20] sm:$0xff]
    %v434 = vld [vmem:[%s428 + $0x28] sm:$0xff]
    %v435 = vld [vmem:[%s428 + $0x30] sm:$0xff]
    %v436 = vld [vmem:[%s428 + $0x38] sm:$0xff]
    %v437 = vld [vmem:[%s428 + $0x40] sm:$0xff]
    %v438 = vld [vmem:[%s428 + $0x48] sm:$0xff]
    %v439 = vld [vmem:[%s428 + $0x50] sm:$0xff]
    %v440 = vld [vmem:[%s428 + $0x58] sm:$0xff]
    %v441 = vld [vmem:[%s428 + $0x60] sm:$0xff]
    %v442 = vld [vmem:[%s428 + $0x68] sm:$0xff]
    %v443 = vld [vmem:[%s428 + $0x70] sm:$0xff]
    %v444 = vld [vmem:[%s428 + $0x78] sm:$0xff]
    %v445 = vld [vmem:[%s428 + $0x80] sm:$0xff]
    %v446 = vld [vmem:[%s428 + $0x88] sm:$0xff]
    %v447 = vld [vmem:[%s428 + $0x90] sm:$0xff]
    %v448 = vld [vmem:[%s428 + $0x98] sm:$0xff]
    %v449 = vld [vmem:[%s428 + $0xa0] sm:$0xff]
    %v450 = vld [vmem:[%s428 + $0xa8] sm:$0xff]
    %v451 = vld [vmem:[%s428 + $0xb0] sm:$0xff]
    %v452 = vld [vmem:[%s428 + $0xb8] sm:$0xff]
    %v453 = vld [vmem:[%s428 + $0xc0] sm:$0xff]
    %v454 = vld [vmem:[%s428 + $0xc8] sm:$0xff]
    %v455 = vld [vmem:[%s428 + $0xd0] sm:$0xff]
    %v456 = vld [vmem:[%s428 + $0xd8] sm:$0xff]
    %v457 = vld [vmem:[%s428 + $0xe0] sm:$0xff]
    %v458 = vld [vmem:[%s428 + $0xe8] sm:$0xff]
    %v459 = vld [vmem:[%s428 + $0xf0] sm:$0xff]
    %v460 = vld [vmem:[%s428 + $0xf8] sm:$0xff]
    %461 = vmatprep.subr.mxu0 0.0
    %462 = vmatpush1.msra.mxu0 %v444
    %463 = vmatprep.subr.mxu0 0.0
    %464 = vmatpush1.msra.mxu0 %v443
    %465 = vmatprep.subr.mxu0 0.0
    %466 = vmatpush1.msra.mxu0 %v442
    %467 = vmatprep.subr.mxu0 0.0
    %468 = vmatpush1.msra.mxu0 %v441
    %469 = vmatprep.subr.mxu0 0.0
    %470 = vmatpush1.msra.mxu0 %v440
    %471 = vmatprep.subr.mxu0 0.0
    %472 = vmatpush1.msra.mxu0 %v439
    %473 = vmatprep.subr.mxu0 0.0
    %474 = vmatpush1.msra.mxu0 %v438
    %475 = vmatprep.subr.mxu0 0.0
    %476 = vmatpush1.msra.mxu0 %v437
    %477 = vmatprep.subr.mxu0 0.0
    %478 = vmatpush1.msra.mxu0 %v436
    %479 = vmatprep.subr.mxu0 0.0
    %480 = vmatpush1.msra.mxu0 %v435
    %481 = vmatprep.subr.mxu0 0.0
    %482 = vmatpush1.msra.mxu0 %v434
    %483 = vmatprep.subr.mxu0 0.0
    %484 = vmatpush1.msra.mxu0 %v433
    %485 = vmatprep.subr.mxu0 0.0
    %486 = vmatpush1.msra.mxu0 %v432
    %487 = vmatprep.subr.mxu0 0.0
    %488 = vmatpush1.msra.mxu0 %v431
    %489 = vmatprep.subr.mxu0 0.0
    %490 = vmatpush1.msra.mxu0 %v430
    %491 = vmatprep.subr.mxu0 0.0
    %492 = vmatpush1.msra.mxu0 %v429
    %493 = vmatprep.subr.mxu0 0.0
    %494 = vmatpush2.msra.mxu0 %v460
    %495 = vmatprep.subr.mxu0 0.0
    %496 = vmatpush2.msra.mxu0 %v459
    %497 = vmatprep.subr.mxu0 0.0
    %498 = vmatpush2.msra.mxu0 %v458
    %499 = vmatprep.subr.mxu0 0.0
    %500 = vmatpush2.msra.mxu0 %v457
    %501 = vmatprep.subr.mxu0 0.0
    %502 = vmatpush2.msra.mxu0 %v456
    %503 = vmatprep.subr.mxu0 0.0
    %504 = vmatpush2.msra.mxu0 %v455
    %505 = vmatprep.subr.mxu0 0.0
    %506 = vmatpush2.msra.mxu0 %v454
    %507 = vmatprep.subr.mxu0 0.0
    %508 = vmatpush2.msra.mxu0 %v453
    %509 = vmatprep.subr.mxu0 0.0
    %510 = vmatpush2.msra.mxu0 %v452
    %511 = vmatprep.subr.mxu0 0.0
    %512 = vmatpush2.msra.mxu0 %v451
    %513 = vmatprep.subr.mxu0 0.0
    %514 = vmatpush2.msra.mxu0 %v450
    %515 = vmatprep.subr.mxu0 0.0
    %516 = vmatpush2.msra.mxu0 %v449
    %517 = vmatprep.subr.mxu0 0.0
    %518 = vmatpush2.msra.mxu0 %v448
    %519 = vmatprep.subr.mxu0 0.0
    %520 = vmatpush2.msra.mxu0 %v447
    %521 = vmatprep.subr.mxu0 0.0
    %522 = vmatpush2.msra.mxu0 %v446
    %523 = vmatprep.subr.mxu0 0.0
    %524 = vmatpush2.msra.mxu0 %v445
    %525 = vmatprep.mubr.f32.mxu0 %v427
    %526 = vmatmul.mubr.f32.gmra.mxu0 %v426
    %v527 = vpop.f32.mrf.mxu0
    %v528 = vadd.f32 0.0, %v527
    %v529 = vpop.f32.mrf.mxu0
    %530 = vdwg.mxu0
    %v531 = vadd.f32 %v259, %v528
    %s532 = scalar_lea.vmem %s3, 768
    %v533 = vld [vmem:[%s532] sm:$0xff]
    %v534 = vld [vmem:[%s532 + $0x8] sm:$0xff]
    %v535 = vld [vmem:[%s532 + $0x10] sm:$0xff]
    %v536 = vld [vmem:[%s532 + $0x18] sm:$0xff]
    %v537 = vld [vmem:[%s532 + $0x20] sm:$0xff]
    %v538 = vld [vmem:[%s532 + $0x28] sm:$0xff]
    %v539 = vld [vmem:[%s532 + $0x30] sm:$0xff]
    %v540 = vld [vmem:[%s532 + $0x38] sm:$0xff]
    %v541 = vld [vmem:[%s532 + $0x40] sm:$0xff]
    %v542 = vld [vmem:[%s532 + $0x48] sm:$0xff]
    %v543 = vld [vmem:[%s532 + $0x50] sm:$0xff]
    %v544 = vld [vmem:[%s532 + $0x58] sm:$0xff]
    %v545 = vld [vmem:[%s532 + $0x60] sm:$0xff]
    %v546 = vld [vmem:[%s532 + $0x68] sm:$0xff]
    %v547 = vld [vmem:[%s532 + $0x70] sm:$0xff]
    %v548 = vld [vmem:[%s532 + $0x78] sm:$0xff]
    %v549 = vld [vmem:[%s532 + $0x80] sm:$0xff]
    %v550 = vld [vmem:[%s532 + $0x88] sm:$0xff]
    %v551 = vld [vmem:[%s532 + $0x90] sm:$0xff]
    %v552 = vld [vmem:[%s532 + $0x98] sm:$0xff]
    %v553 = vld [vmem:[%s532 + $0xa0] sm:$0xff]
    %v554 = vld [vmem:[%s532 + $0xa8] sm:$0xff]
    %v555 = vld [vmem:[%s532 + $0xb0] sm:$0xff]
    %v556 = vld [vmem:[%s532 + $0xb8] sm:$0xff]
    %v557 = vld [vmem:[%s532 + $0xc0] sm:$0xff]
    %v558 = vld [vmem:[%s532 + $0xc8] sm:$0xff]
    %v559 = vld [vmem:[%s532 + $0xd0] sm:$0xff]
    %v560 = vld [vmem:[%s532 + $0xd8] sm:$0xff]
    %v561 = vld [vmem:[%s532 + $0xe0] sm:$0xff]
    %v562 = vld [vmem:[%s532 + $0xe8] sm:$0xff]
    %v563 = vld [vmem:[%s532 + $0xf0] sm:$0xff]
    %v564 = vld [vmem:[%s532 + $0xf8] sm:$0xff]
    %565 = vmatprep.subr.mxu0 0.0
    %566 = vmatpush1.msra.mxu0 %v548
    %567 = vmatprep.subr.mxu0 0.0
    %568 = vmatpush1.msra.mxu0 %v547
    %569 = vmatprep.subr.mxu0 0.0
    %570 = vmatpush1.msra.mxu0 %v546
    %571 = vmatprep.subr.mxu0 0.0
    %572 = vmatpush1.msra.mxu0 %v545
    %573 = vmatprep.subr.mxu0 0.0
    %574 = vmatpush1.msra.mxu0 %v544
    %575 = vmatprep.subr.mxu0 0.0
    %576 = vmatpush1.msra.mxu0 %v543
    %577 = vmatprep.subr.mxu0 0.0
    %578 = vmatpush1.msra.mxu0 %v542
    %579 = vmatprep.subr.mxu0 0.0
    %580 = vmatpush1.msra.mxu0 %v541
    %581 = vmatprep.subr.mxu0 0.0
    %582 = vmatpush1.msra.mxu0 %v540
    %583 = vmatprep.subr.mxu0 0.0
    %584 = vmatpush1.msra.mxu0 %v539
    %585 = vmatprep.subr.mxu0 0.0
    %586 = vmatpush1.msra.mxu0 %v538
    %587 = vmatprep.subr.mxu0 0.0
    %588 = vmatpush1.msra.mxu0 %v537
    %589 = vmatprep.subr.mxu0 0.0
    %590 = vmatpush1.msra.mxu0 %v536
    %591 = vmatprep.subr.mxu0 0.0
    %592 = vmatpush1.msra.mxu0 %v535
    %593 = vmatprep.subr.mxu0 0.0
    %594 = vmatpush1.msra.mxu0 %v534
    %595 = vmatprep.subr.mxu0 0.0
    %596 = vmatpush1.msra.mxu0 %v533
    %597 = vmatprep.subr.mxu0 0.0
    %598 = vmatpush2.msra.mxu0 %v564
    %599 = vmatprep.subr.mxu0 0.0
    %600 = vmatpush2.msra.mxu0 %v563
    %601 = vmatprep.subr.mxu0 0.0
    %602 = vmatpush2.msra.mxu0 %v562
    %603 = vmatprep.subr.mxu0 0.0
    %604 = vmatpush2.msra.mxu0 %v561
    %605 = vmatprep.subr.mxu0 0.0
    %606 = vmatpush2.msra.mxu0 %v560
    %607 = vmatprep.subr.mxu0 0.0
    %608 = vmatpush2.msra.mxu0 %v559
    %609 = vmatprep.subr.mxu0 0.0
    %610 = vmatpush2.msra.mxu0 %v558
    %611 = vmatprep.subr.mxu0 0.0
    %612 = vmatpush2.msra.mxu0 %v557
    %613 = vmatprep.subr.mxu0 0.0
    %614 = vmatpush2.msra.mxu0 %v556
    %615 = vmatprep.subr.mxu0 0.0
    %616 = vmatpush2.msra.mxu0 %v555
    %617 = vmatprep.subr.mxu0 0.0
    %618 = vmatpush2.msra.mxu0 %v554
    %619 = vmatprep.subr.mxu0 0.0
    %620 = vmatpush2.msra.mxu0 %v553
    %621 = vmatprep.subr.mxu0 0.0
    %622 = vmatpush2.msra.mxu0 %v552
    %623 = vmatprep.subr.mxu0 0.0
    %624 = vmatpush2.msra.mxu0 %v551
    %625 = vmatprep.subr.mxu0 0.0
    %626 = vmatpush2.msra.mxu0 %v550
    %627 = vmatprep.subr.mxu0 0.0
    %628 = vmatpush2.msra.mxu0 %v549
    %629 = vmatprep.mubr.f32.mxu0 %v427
    %630 = vmatmul.mubr.f32.gmra.mxu0 %v426
    %v631 = vpop.f32.mrf.mxu0
    %v632 = vadd.f32 0.0, %v631
    %v633 = vpop.f32.mrf.mxu0
    %634 = vdwg.mxu0
    %635 = vmatprep.subr.mxu0 0.0
    %636 = vmatpush1.msra.mxu0 %v276
    %637 = vmatprep.subr.mxu0 0.0
    %638 = vmatpush1.msra.mxu0 %v275
    %639 = vmatprep.subr.mxu0 0.0
    %640 = vmatpush1.msra.mxu0 %v274
    %641 = vmatprep.subr.mxu0 0.0
    %642 = vmatpush1.msra.mxu0 %v273
    %643 = vmatprep.subr.mxu0 0.0
    %644 = vmatpush1.msra.mxu0 %v272
    %645 = vmatprep.subr.mxu0 0.0
    %646 = vmatpush1.msra.mxu0 %v271
    %647 = vmatprep.subr.mxu0 0.0
    %648 = vmatpush1.msra.mxu0 %v270
    %649 = vmatprep.subr.mxu0 0.0
    %650 = vmatpush1.msra.mxu0 %v269
    %651 = vmatprep.subr.mxu0 0.0
    %652 = vmatpush1.msra.mxu0 %v268
    %653 = vmatprep.subr.mxu0 0.0
    %654 = vmatpush1.msra.mxu0 %v267
    %655 = vmatprep.subr.mxu0 0.0
    %656 = vmatpush1.msra.mxu0 %v266
    %657 = vmatprep.subr.mxu0 0.0
    %658 = vmatpush1.msra.mxu0 %v265
    %659 = vmatprep.subr.mxu0 0.0
    %660 = vmatpush1.msra.mxu0 %v264
    %661 = vmatprep.subr.mxu0 0.0
    %662 = vmatpush1.msra.mxu0 %v263
    %663 = vmatprep.subr.mxu0 0.0
    %664 = vmatpush1.msra.mxu0 %v262
    %665 = vmatprep.subr.mxu0 0.0
    %666 = vmatpush1.msra.mxu0 %v261
    %667 = vmatprep.subr.mxu0 0.0
    %668 = vmatpush2.msra.mxu0 %v292
    %669 = vmatprep.subr.mxu0 0.0
    %670 = vmatpush2.msra.mxu0 %v291
    %671 = vmatprep.subr.mxu0 0.0
    %672 = vmatpush2.msra.mxu0 %v290
    %673 = vmatprep.subr.mxu0 0.0
    %674 = vmatpush2.msra.mxu0 %v289
    %675 = vmatprep.subr.mxu0 0.0
    %676 = vmatpush2.msra.mxu0 %v288
    %677 = vmatprep.subr.mxu0 0.0
    %678 = vmatpush2.msra.mxu0 %v287
    %679 = vmatprep.subr.mxu0 0.0
    %680 = vmatpush2.msra.mxu0 %v286
    %681 = vmatprep.subr.mxu0 0.0
    %682 = vmatpush2.msra.mxu0 %v285
    %683 = vmatprep.subr.mxu0 0.0
    %684 = vmatpush2.msra.mxu0 %v284
    %685 = vmatprep.subr.mxu0 0.0
    %686 = vmatpush2.msra.mxu0 %v283
    %687 = vmatprep.subr.mxu0 0.0
    %688 = vmatpush2.msra.mxu0 %v282
    %689 = vmatprep.subr.mxu0 0.0
    %690 = vmatpush2.msra.mxu0 %v281
    %691 = vmatprep.subr.mxu0 0.0
    %692 = vmatpush2.msra.mxu0 %v280
    %693 = vmatprep.subr.mxu0 0.0
    %694 = vmatpush2.msra.mxu0 %v279
    %695 = vmatprep.subr.mxu0 0.0
    %696 = vmatpush2.msra.mxu0 %v278
    %697 = vmatprep.subr.mxu0 0.0
    %698 = vmatpush2.msra.mxu0 %v277
    %699 = vmatprep.mubr.f32.mxu0 %v156
    %700 = vmatmul.mubr.f32.gmra.mxu0 %v155
    %v701 = vpop.f32.mrf.mxu0
    %v702 = vadd.f32 %v632, %v701
    %v703 = vpop.f32.mrf.mxu0
    %704 = vdwg.mxu0
    %s705 = scalar_lea.vmem %s2, 128
    %v706 = vld [vmem:[%s705] sm:$0xff]
    %v707 = vld [vmem:[%s705 + $0x8] sm:$0xff]
    %v708 = vld [vmem:[%s705 + $0x10] sm:$0xff]
    %v709 = vld [vmem:[%s705 + $0x18] sm:$0xff]
    %v710 = vld [vmem:[%s705 + $0x20] sm:$0xff]
    %v711 = vld [vmem:[%s705 + $0x28] sm:$0xff]
    %v712 = vld [vmem:[%s705 + $0x30] sm:$0xff]
    %v713 = vld [vmem:[%s705 + $0x38] sm:$0xff]
    %v715 = vsel %vm30, %v531, 0
    %717 = vmatprep.subr.mxu0 0.0
    %718 = vmatpush1.msra.mxu0 0.0
    %719 = vmatprep.subr.mxu0 0.0
    %720 = vmatpush1.msra.mxu0 0.0
    %721 = vmatprep.subr.mxu0 0.0
    %722 = vmatpush1.msra.mxu0 0.0
    %723 = vmatprep.subr.mxu0 0.0
    %724 = vmatpush1.msra.mxu0 0.0
    %725 = vmatprep.subr.mxu0 0.0
    %726 = vmatpush1.msra.mxu0 0.0
    %727 = vmatprep.subr.mxu0 0.0
    %728 = vmatpush1.msra.mxu0 0.0
    %729 = vmatprep.subr.mxu0 0.0
    %730 = vmatpush1.msra.mxu0 0.0
    %731 = vmatprep.subr.mxu0 0.0
    %732 = vmatpush1.msra.mxu0 0.0
    %733 = vmatprep.subr.mxu0 0.0
    %734 = vmatpush1.msra.mxu0 0.0
    %735 = vmatprep.subr.mxu0 0.0
    %736 = vmatpush1.msra.mxu0 0.0
    %737 = vmatprep.subr.mxu0 0.0
    %738 = vmatpush1.msra.mxu0 0.0
    %739 = vmatprep.subr.mxu0 0.0
    %740 = vmatpush1.msra.mxu0 0.0
    %741 = vmatprep.subr.mxu0 %v713
    %742 = vmatpush1.msra.mxu0 %v712
    %743 = vmatprep.subr.mxu0 %v711
    %744 = vmatpush1.msra.mxu0 %v710
    %745 = vmatprep.subr.mxu0 %v709
    %746 = vmatpush1.msra.mxu0 %v708
    %747 = vmatprep.subr.mxu0 %v707
    %748 = vmatpush1.msra.mxu0 %v706
    %749 = vmatprep.subr.mxu0 0.0
    %750 = vmatpush2.msra.mxu0 0.0
    %751 = vmatprep.subr.mxu0 0.0
    %752 = vmatpush2.msra.mxu0 0.0
    %753 = vmatprep.subr.mxu0 0.0
    %754 = vmatpush2.msra.mxu0 0.0
    %755 = vmatprep.subr.mxu0 0.0
    %756 = vmatpush2.msra.mxu0 0.0
    %757 = vmatprep.subr.mxu0 0.0
    %758 = vmatpush2.msra.mxu0 0.0
    %759 = vmatprep.subr.mxu0 0.0
    %760 = vmatpush2.msra.mxu0 0.0
    %761 = vmatprep.subr.mxu0 0.0
    %762 = vmatpush2.msra.mxu0 0.0
    %763 = vmatprep.subr.mxu0 0.0
    %764 = vmatpush2.msra.mxu0 0.0
    %765 = vmatprep.subr.mxu0 0.0
    %766 = vmatpush2.msra.mxu0 0.0
    %767 = vmatprep.subr.mxu0 0.0
    %768 = vmatpush2.msra.mxu0 0.0
    %769 = vmatprep.subr.mxu0 0.0
    %770 = vmatpush2.msra.mxu0 0.0
    %771 = vmatprep.subr.mxu0 0.0
    %772 = vmatpush2.msra.mxu0 0.0
    %773 = vmatprep.subr.mxu0 0.0
    %774 = vmatpush2.msra.mxu0 0.0
    %775 = vmatprep.subr.mxu0 0.0
    %776 = vmatpush2.msra.mxu0 0.0
    %777 = vmatprep.subr.mxu0 0.0
    %778 = vmatpush2.msra.mxu0 0.0
    %779 = vmatprep.subr.mxu0 0.0
    %780 = vmatpush2.msra.mxu0 0.0
    %781 = vmatprep.mubr.f32.mxu0 0.0
    %782 = vmatmul.mubr.f32.gmra.mxu0 %v715
    %v783 = vpop.f32.mrf.mxu0
    %v784 = vadd.f32 0.0, %v783
    %v785 = vpop.f32.mrf.mxu0
    %v786 = vadd.f32 0.0, %v785
    %787 = vdwg.mxu0
    %v788 = vmul.f32 %v784, 0.70710677
    %v789 = vmul.f32 %v786, 0.70710677
    %v790 = vand.u32 2147483647, %v788
    %v791 = vand.u32 2147483647, %v789
    %v792 = vmul.f32 %v790, 0.3275911
    %v793 = vmul.f32 %v791, 0.3275911
    %v794 = vadd.f32 %v792, 1.0
    %v795 = vadd.f32 %v793, 1.0
    %v796 = vrcp.pop %v794
    %v797 = vrcp.pop %v795
    %v798 = vmul.f32 %v796, 1.0614054
    %v799 = vmul.f32 %v797, 1.0614054
    %v800 = vadd.f32 %v798, -1.4531521
    %v801 = vadd.f32 %v799, -1.4531521
    %v802 = vmul.f32 %v800, %v796
    %v803 = vmul.f32 %v801, %v797
    %v804 = vadd.f32 %v802, 1.4214138
    %v805 = vadd.f32 %v803, 1.4214138
    %v806 = vmul.f32 %v804, %v796
    %v807 = vmul.f32 %v805, %v797
    %v808 = vadd.f32 %v806, -0.28449672
    %v809 = vadd.f32 %v807, -0.28449672
    %v810 = vmul.f32 %v808, %v796
    %v811 = vmul.f32 %v809, %v797
    %v812 = vadd.f32 %v810, 0.2548296
    %v813 = vadd.f32 %v811, 0.2548296
    %v814 = vmul.f32 %v812, %v796
    %v815 = vmul.f32 %v813, %v797
    %v816 = vsub.f32 0.0, %v790
    %v817 = vsub.f32 0.0, %v791
    %v818 = vmul.f32 %v816, %v790
    %v819 = vmul.f32 %v817, %v791
    %v820 = vmul.f32 %v818, 1.442695
    %v821 = vpow.pop %v820
    %v822 = vmul.f32 %v819, 1.442695
    %v823 = vpow.pop %v822
    %v824 = vmul.f32 %v814, %v821
    %v825 = vmul.f32 %v815, %v823
    %v826 = vsub.f32 1.0, %v824
    %v827 = vsub.f32 1.0, %v825
    %vm828 = vcmp.ge.f32.partialorder %v788, 0.0
    %vm829 = vcmp.ge.f32.partialorder %v789, 0.0
    %v830 = vsub.f32 0.0, %v826
    %v831 = vsub.f32 0.0, %v827
    %v832 = vsel %vm828, %v826, %v830
    %v833 = vsel %vm829, %v827, %v831
    %v834 = vmul.f32 %v784, 0.5
    %v835 = vmul.f32 %v786, 0.5
    %v836 = vadd.f32 %v832, 1.0
    %v837 = vadd.f32 %v833, 1.0
    %v838 = vmul.f32 %v834, %v836
    %v839 = vmul.f32 %v835, %v837
    %s840 = scalar_lea.vmem %s3, 1280
    %v841 = vld [vmem:[%s840] sm:$0xff]
    %v842 = vld [vmem:[%s840 + $0x8] sm:$0xff]
    %v843 = vld [vmem:[%s840 + $0x10] sm:$0xff]
    %v844 = vld [vmem:[%s840 + $0x18] sm:$0xff]
    %v845 = vld [vmem:[%s840 + $0x20] sm:$0xff]
    %v846 = vld [vmem:[%s840 + $0x28] sm:$0xff]
    %v847 = vld [vmem:[%s840 + $0x30] sm:$0xff]
    %v848 = vld [vmem:[%s840 + $0x38] sm:$0xff]
    %v849 = vld [vmem:[%s840 + $0x40] sm:$0xff]
    %v850 = vld [vmem:[%s840 + $0x48] sm:$0xff]
    %v851 = vld [vmem:[%s840 + $0x50] sm:$0xff]
    %v852 = vld [vmem:[%s840 + $0x58] sm:$0xff]
    %v853 = vld [vmem:[%s840 + $0x60] sm:$0xff]
    %v854 = vld [vmem:[%s840 + $0x68] sm:$0xff]
    %v855 = vld [vmem:[%s840 + $0x70] sm:$0xff]
    %v856 = vld [vmem:[%s840 + $0x78] sm:$0xff]
    %v857 = vld [vmem:[%s840 + $0x80] sm:$0xff]
    %v858 = vld [vmem:[%s840 + $0x88] sm:$0xff]
    %v859 = vld [vmem:[%s840 + $0x90] sm:$0xff]
    %v860 = vld [vmem:[%s840 + $0x98] sm:$0xff]
    %v861 = vld [vmem:[%s840 + $0xa0] sm:$0xff]
    %v862 = vld [vmem:[%s840 + $0xa8] sm:$0xff]
    %v863 = vld [vmem:[%s840 + $0xb0] sm:$0xff]
    %v864 = vld [vmem:[%s840 + $0xb8] sm:$0xff]
    %v865 = vld [vmem:[%s840 + $0xc0] sm:$0xff]
    %v866 = vld [vmem:[%s840 + $0xc8] sm:$0xff]
    %v867 = vld [vmem:[%s840 + $0xd0] sm:$0xff]
    %v868 = vld [vmem:[%s840 + $0xd8] sm:$0xff]
    %v869 = vld [vmem:[%s840 + $0xe0] sm:$0xff]
    %v870 = vld [vmem:[%s840 + $0xe8] sm:$0xff]
    %v871 = vld [vmem:[%s840 + $0xf0] sm:$0xff]
    %v872 = vld [vmem:[%s840 + $0xf8] sm:$0xff]
    %873 = vmatprep.subr.mxu0 0.0
    %874 = vmatpush1.msra.mxu0 %v856
    %875 = vmatprep.subr.mxu0 0.0
    %876 = vmatpush1.msra.mxu0 %v855
    %877 = vmatprep.subr.mxu0 0.0
    %878 = vmatpush1.msra.mxu0 %v854
    %879 = vmatprep.subr.mxu0 0.0
    %880 = vmatpush1.msra.mxu0 %v853
    %881 = vmatprep.subr.mxu0 0.0
    %882 = vmatpush1.msra.mxu0 %v852
    %883 = vmatprep.subr.mxu0 0.0
    %884 = vmatpush1.msra.mxu0 %v851
    %885 = vmatprep.subr.mxu0 0.0
    %886 = vmatpush1.msra.mxu0 %v850
    %887 = vmatprep.subr.mxu0 0.0
    %888 = vmatpush1.msra.mxu0 %v849
    %889 = vmatprep.subr.mxu0 0.0
    %890 = vmatpush1.msra.mxu0 %v848
    %891 = vmatprep.subr.mxu0 0.0
    %892 = vmatpush1.msra.mxu0 %v847
    %893 = vmatprep.subr.mxu0 0.0
    %894 = vmatpush1.msra.mxu0 %v846
    %895 = vmatprep.subr.mxu0 0.0
    %896 = vmatpush1.msra.mxu0 %v845
    %897 = vmatprep.subr.mxu0 0.0
    %898 = vmatpush1.msra.mxu0 %v844
    %899 = vmatprep.subr.mxu0 0.0
    %900 = vmatpush1.msra.mxu0 %v843
    %901 = vmatprep.subr.mxu0 0.0
    %902 = vmatpush1.msra.mxu0 %v842
    %903 = vmatprep.subr.mxu0 0.0
    %904 = vmatpush1.msra.mxu0 %v841
    %905 = vmatprep.subr.mxu0 0.0
    %906 = vmatpush2.msra.mxu0 %v872
    %907 = vmatprep.subr.mxu0 0.0
    %908 = vmatpush2.msra.mxu0 %v871
    %909 = vmatprep.subr.mxu0 0.0
    %910 = vmatpush2.msra.mxu0 %v870
    %911 = vmatprep.subr.mxu0 0.0
    %912 = vmatpush2.msra.mxu0 %v869
    %913 = vmatprep.subr.mxu0 0.0
    %914 = vmatpush2.msra.mxu0 %v868
    %915 = vmatprep.subr.mxu0 0.0
    %916 = vmatpush2.msra.mxu0 %v867
    %917 = vmatprep.subr.mxu0 0.0
    %918 = vmatpush2.msra.mxu0 %v866
    %919 = vmatprep.subr.mxu0 0.0
    %920 = vmatpush2.msra.mxu0 %v865
    %921 = vmatprep.subr.mxu0 0.0
    %922 = vmatpush2.msra.mxu0 %v864
    %923 = vmatprep.subr.mxu0 0.0
    %924 = vmatpush2.msra.mxu0 %v863
    %925 = vmatprep.subr.mxu0 0.0
    %926 = vmatpush2.msra.mxu0 %v862
    %927 = vmatprep.subr.mxu0 0.0
    %928 = vmatpush2.msra.mxu0 %v861
    %929 = vmatprep.subr.mxu0 0.0
    %930 = vmatpush2.msra.mxu0 %v860
    %931 = vmatprep.subr.mxu0 0.0
    %932 = vmatpush2.msra.mxu0 %v859
    %933 = vmatprep.subr.mxu0 0.0
    %934 = vmatpush2.msra.mxu0 %v858
    %935 = vmatprep.subr.mxu0 0.0
    %936 = vmatpush2.msra.mxu0 %v857
    %937 = vmatprep.mubr.f32.mxu0 %v839
    %938 = vmatmul.mubr.f32.gmra.mxu0 %v838
    %v939 = vpop.f32.mrf.mxu0
    %v940 = vadd.f32 0.0, %v939
    %v941 = vpop.f32.mrf.mxu0
    %942 = vdwg.mxu0
    %v943 = vadd.f32 %v702, %v940
    %v944 = vmul.f32 %v943, 0.70710677
    %v945 = vand.u32 2147483647, %v944
    %v946 = vmul.f32 %v945, 0.3275911
    %v947 = vadd.f32 %v946, 1.0
    %v948 = vrcp.pop %v947
    %v949 = vmul.f32 %v948, 1.0614054
    %v950 = vadd.f32 %v949, -1.4531521
    %v951 = vmul.f32 %v950, %v948
    %v952 = vadd.f32 %v951, 1.4214138
    %v953 = vmul.f32 %v952, %v948
    %v954 = vadd.f32 %v953, -0.28449672
    %v955 = vmul.f32 %v954, %v948
    %v956 = vadd.f32 %v955, 0.2548296
    %v957 = vmul.f32 %v956, %v948
    %v958 = vsub.f32 0.0, %v945
    %v959 = vmul.f32 %v958, %v945
    %v960 = vmul.f32 %v959, 1.442695
    %v961 = vpow.pop %v960
    %v962 = vmul.f32 %v957, %v961
    %v963 = vsub.f32 1.0, %v962
    %vm964 = vcmp.ge.f32.partialorder %v944, 0.0
    %v965 = vsub.f32 0.0, %v963
    %v966 = vsel %vm964, %v963, %v965
    %v967 = vmul.f32 %v943, 0.5
    %v968 = vadd.f32 %v966, 1.0
    %v969 = vmul.f32 %v967, %v968
    %v970 = vld [vmem:[%s1] sm:$0x3]
    %v971 = vld [vmem:[%s4] sm:$0xff]
    %v972 = vld [vmem:[%s4 + $0x8] sm:$0xff]
    %v973 = vld [vmem:[%s4 + $0x10] sm:$0xff]
    %v974 = vld [vmem:[%s4 + $0x18] sm:$0xff]
    %v975 = vld [vmem:[%s4 + $0x20] sm:$0xff]
    %v976 = vld [vmem:[%s4 + $0x28] sm:$0x1]
    %v977 = vld [vmem:[%s4 + $0x29] sm:$0x1]
    %v978 = vlaneseq
    %v979 = vshrl.u32 %v978, 7
    %v980 = vsub.s32 0, %v979
    %v981 = vrot.slane %v976, %v980
    %v983 = vsel %vm30, %v969, 0
    %985 = vmatprep.subr.mxu0 0.0
    %986 = vmatpush1.msra.mxu0 0.0
    %987 = vmatprep.subr.mxu0 0.0
    %988 = vmatpush1.msra.mxu0 0.0
    %989 = vmatprep.subr.mxu0 0.0
    %990 = vmatpush1.msra.mxu0 0.0
    %991 = vmatprep.subr.mxu0 0.0
    %992 = vmatpush1.msra.mxu0 0.0
    %993 = vmatprep.subr.mxu0 0.0
    %994 = vmatpush1.msra.mxu0 0.0
    %995 = vmatprep.subr.mxu0 0.0
    %996 = vmatpush1.msra.mxu0 0.0
    %997 = vmatprep.subr.mxu0 0.0
    %998 = vmatpush1.msra.mxu0 0.0
    %999 = vmatprep.subr.mxu0 0.0
    %1000 = vmatpush1.msra.mxu0 0.0
    %1001 = vmatprep.subr.mxu0 0.0
    %1002 = vmatpush1.msra.mxu0 0.0
    %1003 = vmatprep.subr.mxu0 0.0
    %1004 = vmatpush1.msra.mxu0 0.0
    %1005 = vmatprep.subr.mxu0 0.0
    %1006 = vmatpush1.msra.mxu0 0.0
    %1007 = vmatprep.subr.mxu0 0.0
    %1008 = vmatpush1.msra.mxu0 0.0
    %1009 = vmatprep.subr.mxu0 0.0
    %1010 = vmatpush1.msra.mxu0 %v974
    %1011 = vmatprep.subr.mxu0 0.0
    %1012 = vmatpush1.msra.mxu0 %v973
    %1013 = vmatprep.subr.mxu0 0.0
    %1014 = vmatpush1.msra.mxu0 %v972
    %1015 = vmatprep.subr.mxu0 0.0
    %1016 = vmatpush1.msra.mxu0 %v971
    %1017 = vmatprep.subr.mxu0 0.0
    %1018 = vmatpush2.msra.mxu0 0.0
    %1019 = vmatprep.subr.mxu0 0.0
    %1020 = vmatpush2.msra.mxu0 0.0
    %1021 = vmatprep.subr.mxu0 0.0
    %1022 = vmatpush2.msra.mxu0 0.0
    %1023 = vmatprep.subr.mxu0 0.0
    %1024 = vmatpush2.msra.mxu0 0.0
    %1025 = vmatprep.subr.mxu0 0.0
    %1026 = vmatpush2.msra.mxu0 0.0
    %1027 = vmatprep.subr.mxu0 0.0
    %1028 = vmatpush2.msra.mxu0 0.0
    %1029 = vmatprep.subr.mxu0 0.0
    %1030 = vmatpush2.msra.mxu0 0.0
    %1031 = vmatprep.subr.mxu0 0.0
    %1032 = vmatpush2.msra.mxu0 0.0
    %1033 = vmatprep.subr.mxu0 0.0
    %1034 = vmatpush2.msra.mxu0 0.0
    %1035 = vmatprep.subr.mxu0 0.0
    %1036 = vmatpush2.msra.mxu0 0.0
    %1037 = vmatprep.subr.mxu0 0.0
    %1038 = vmatpush2.msra.mxu0 0.0
    %1039 = vmatprep.subr.mxu0 0.0
    %1040 = vmatpush2.msra.mxu0 0.0
    %1041 = vmatprep.subr.mxu0 0.0
    %1042 = vmatpush2.msra.mxu0 0.0
    %1043 = vmatprep.subr.mxu0 0.0
    %1044 = vmatpush2.msra.mxu0 0.0
    %1045 = vmatprep.subr.mxu0 0.0
    %1046 = vmatpush2.msra.mxu0 0.0
    %1047 = vmatprep.subr.mxu0 0.0
    %1048 = vmatpush2.msra.mxu0 0.0
    %1049 = vmatprep.mubr.f32.mxu0 0.0
    %1050 = vmatmul.mubr.f32.gmra.mxu0 %v983
    %v1051 = vpop.f32.mrf.mxu0
    %v1052 = vadd.f32 %v981, %v1051
    %v1053 = vpop.f32.mrf.mxu0
    %1054 = vdwg.mxu0
    %v1055 = vlaneseq
    %v1056 = vshrl.u32 %v1055, 7
    %v1057 = vsub.s32 0, %v1056
    %v1058 = vrot.slane %v977, %v1057
    %vm1059 = vcmask 64512
    %v1061 = vsel %vm1059, %v970, 0
    %1063 = vmatprep.subr.mxu0 0.0
    %1064 = vmatpush1.msra.mxu0 0.0
    %1065 = vmatprep.subr.mxu0 0.0
    %1066 = vmatpush1.msra.mxu0 0.0
    %1067 = vmatprep.subr.mxu0 0.0
    %1068 = vmatpush1.msra.mxu0 0.0
    %1069 = vmatprep.subr.mxu0 0.0
    %1070 = vmatpush1.msra.mxu0 0.0
    %1071 = vmatprep.subr.mxu0 0.0
    %1072 = vmatpush1.msra.mxu0 0.0
    %1073 = vmatprep.subr.mxu0 0.0
    %1074 = vmatpush1.msra.mxu0 0.0
    %1075 = vmatprep.subr.mxu0 0.0
    %1076 = vmatpush1.msra.mxu0 0.0
    %1077 = vmatprep.subr.mxu0 0.0
    %1078 = vmatpush1.msra.mxu0 0.0
    %1079 = vmatprep.subr.mxu0 0.0
    %1080 = vmatpush1.msra.mxu0 0.0
    %1081 = vmatprep.subr.mxu0 0.0
    %1082 = vmatpush1.msra.mxu0 0.0
    %1083 = vmatprep.subr.mxu0 0.0
    %1084 = vmatpush1.msra.mxu0 0.0
    %1085 = vmatprep.subr.mxu0 0.0
    %1086 = vmatpush1.msra.mxu0 0.0
    %1087 = vmatprep.subr.mxu0 0.0
    %1088 = vmatpush1.msra.mxu0 0.0
    %1089 = vmatprep.subr.mxu0 0.0
    %1090 = vmatpush1.msra.mxu0 0.0
    %1091 = vmatprep.subr.mxu0 0.0
    %1092 = vmatpush1.msra.mxu0 0.0
    %1093 = vmatprep.subr.mxu0 0.0
    %1094 = vmatpush1.msra.mxu0 %v975
    %1095 = vmatprep.subr.mxu0 0.0
    %1096 = vmatpush2.msra.mxu0 0.0
    %1097 = vmatprep.subr.mxu0 0.0
    %1098 = vmatpush2.msra.mxu0 0.0
    %1099 = vmatprep.subr.mxu0 0.0
    %1100 = vmatpush2.msra.mxu0 0.0
    %1101 = vmatprep.subr.mxu0 0.0
    %1102 = vmatpush2.msra.mxu0 0.0
    %1103 = vmatprep.subr.mxu0 0.0
    %1104 = vmatpush2.msra.mxu0 0.0
    %1105 = vmatprep.subr.mxu0 0.0
    %1106 = vmatpush2.msra.mxu0 0.0
    %1107 = vmatprep.subr.mxu0 0.0
    %1108 = vmatpush2.msra.mxu0 0.0
    %1109 = vmatprep.subr.mxu0 0.0
    %1110 = vmatpush2.msra.mxu0 0.0
    %1111 = vmatprep.subr.mxu0 0.0
    %1112 = vmatpush2.msra.mxu0 0.0
    %1113 = vmatprep.subr.mxu0 0.0
    %1114 = vmatpush2.msra.mxu0 0.0
    %1115 = vmatprep.subr.mxu0 0.0
    %1116 = vmatpush2.msra.mxu0 0.0
    %1117 = vmatprep.subr.mxu0 0.0
    %1118 = vmatpush2.msra.mxu0 0.0
    %1119 = vmatprep.subr.mxu0 0.0
    %1120 = vmatpush2.msra.mxu0 0.0
    %1121 = vmatprep.subr.mxu0 0.0
    %1122 = vmatpush2.msra.mxu0 0.0
    %1123 = vmatprep.subr.mxu0 0.0
    %1124 = vmatpush2.msra.mxu0 0.0
    %1125 = vmatprep.subr.mxu0 0.0
    %1126 = vmatpush2.msra.mxu0 0.0
    %1127 = vmatprep.mubr.f32.mxu0 0.0
    %1128 = vmatmul.mubr.f32.gmra.mxu0 %v1061
    %v1129 = vpop.f32.mrf.mxu0
    %v1130 = vadd.f32 %v1058, %v1129
    %v1131 = vpop.f32.mrf.mxu0
    %1132 = vdwg.mxu0
    %v1133 = vmul.f32 %v1052, %v1130
    %v1134 = vmul.f32 %v1133, 0.70710677
    %v1135 = vand.u32 2147483647, %v1134
    %v1136 = vmul.f32 %v1135, 0.3275911
    %v1137 = vadd.f32 %v1136, 1.0
    %v1138 = vrcp.pop %v1137
    %v1139 = vmul.f32 %v1138, 1.0614054
    %v1140 = vadd.f32 %v1139, -1.4531521
    %v1141 = vmul.f32 %v1140, %v1138
    %v1142 = vadd.f32 %v1141, 1.4214138
    %v1143 = vmul.f32 %v1142, %v1138
    %v1144 = vadd.f32 %v1143, -0.28449672
    %v1145 = vmul.f32 %v1144, %v1138
    %v1146 = vadd.f32 %v1145, 0.2548296
    %v1147 = vmul.f32 %v1146, %v1138
    %v1148 = vsub.f32 0.0, %v1135
    %v1149 = vmul.f32 %v1148, %v1135
    %v1150 = vmul.f32 %v1149, 1.442695
    %v1151 = vpow.pop %v1150
    %v1152 = vmul.f32 %v1147, %v1151
    %v1153 = vsub.f32 1.0, %v1152
    %vm1154 = vcmp.ge.f32.partialorder %v1134, 0.0
    %v1155 = vsub.f32 0.0, %v1153
    %v1156 = vsel %vm1154, %v1153, %v1155
    %v1157 = vmul.f32 %v1133, 0.5
    %v1158 = vadd.f32 %v1156, 1.0
    %v1159 = vmul.f32 %v1157, %v1158
    %v1160 = vld [vmem:[%s4 + $0x30] sm:$0xff]
    %v1161 = vld [vmem:[%s4 + $0x38] sm:$0xff]
    %v1162 = vld [vmem:[%s4 + $0x40] sm:$0xff]
    %v1163 = vld [vmem:[%s4 + $0x48] sm:$0xff]
    %v1164 = vld [vmem:[%s4 + $0x50] sm:$0x1]
    %v1165 = vlaneseq
    %v1166 = vshrl.u32 %v1165, 7
    %v1167 = vsub.s32 0, %v1166
    %v1168 = vrot.slane %v1164, %v1167
    %v1170 = vsel %vm30, %v1159, 0
    %1172 = vmatprep.subr.mxu0 0.0
    %1173 = vmatpush1.msra.mxu0 0.0
    %1174 = vmatprep.subr.mxu0 0.0
    %1175 = vmatpush1.msra.mxu0 0.0
    %1176 = vmatprep.subr.mxu0 0.0
    %1177 = vmatpush1.msra.mxu0 0.0
    %1178 = vmatprep.subr.mxu0 0.0
    %1179 = vmatpush1.msra.mxu0 0.0
    %1180 = vmatprep.subr.mxu0 0.0
    %1181 = vmatpush1.msra.mxu0 0.0
    %1182 = vmatprep.subr.mxu0 0.0
    %1183 = vmatpush1.msra.mxu0 0.0
    %1184 = vmatprep.subr.mxu0 0.0
    %1185 = vmatpush1.msra.mxu0 0.0
    %1186 = vmatprep.subr.mxu0 0.0
    %1187 = vmatpush1.msra.mxu0 0.0
    %1188 = vmatprep.subr.mxu0 0.0
    %1189 = vmatpush1.msra.mxu0 0.0
    %1190 = vmatprep.subr.mxu0 0.0
    %1191 = vmatpush1.msra.mxu0 0.0
    %1192 = vmatprep.subr.mxu0 0.0
    %1193 = vmatpush1.msra.mxu0 0.0
    %1194 = vmatprep.subr.mxu0 0.0
    %1195 = vmatpush1.msra.mxu0 0.0
    %1196 = vmatprep.subr.mxu0 0.0
    %1197 = vmatpush1.msra.mxu0 %v1163
    %1198 = vmatprep.subr.mxu0 0.0
    %1199 = vmatpush1.msra.mxu0 %v1162
    %1200 = vmatprep.subr.mxu0 0.0
    %1201 = vmatpush1.msra.mxu0 %v1161
    %1202 = vmatprep.subr.mxu0 0.0
    %1203 = vmatpush1.msra.mxu0 %v1160
    %1204 = vmatprep.subr.mxu0 0.0
    %1205 = vmatpush2.msra.mxu0 0.0
    %1206 = vmatprep.subr.mxu0 0.0
    %1207 = vmatpush2.msra.mxu0 0.0
    %1208 = vmatprep.subr.mxu0 0.0
    %1209 = vmatpush2.msra.mxu0 0.0
    %1210 = vmatprep.subr.mxu0 0.0
    %1211 = vmatpush2.msra.mxu0 0.0
    %1212 = vmatprep.subr.mxu0 0.0
    %1213 = vmatpush2.msra.mxu0 0.0
    %1214 = vmatprep.subr.mxu0 0.0
    %1215 = vmatpush2.msra.mxu0 0.0
    %1216 = vmatprep.subr.mxu0 0.0
    %1217 = vmatpush2.msra.mxu0 0.0
    %1218 = vmatprep.subr.mxu0 0.0
    %1219 = vmatpush2.msra.mxu0 0.0
    %1220 = vmatprep.subr.mxu0 0.0
    %1221 = vmatpush2.msra.mxu0 0.0
    %1222 = vmatprep.subr.mxu0 0.0
    %1223 = vmatpush2.msra.mxu0 0.0
    %1224 = vmatprep.subr.mxu0 0.0
    %1225 = vmatpush2.msra.mxu0 0.0
    %1226 = vmatprep.subr.mxu0 0.0
    %1227 = vmatpush2.msra.mxu0 0.0
    %1228 = vmatprep.subr.mxu0 0.0
    %1229 = vmatpush2.msra.mxu0 0.0
    %1230 = vmatprep.subr.mxu0 0.0
    %1231 = vmatpush2.msra.mxu0 0.0
    %1232 = vmatprep.subr.mxu0 0.0
    %1233 = vmatpush2.msra.mxu0 0.0
    %1234 = vmatprep.subr.mxu0 0.0
    %1235 = vmatpush2.msra.mxu0 0.0
    %1236 = vmatprep.mubr.f32.mxu0 0.0
    %1237 = vmatmul.mubr.f32.gmra.mxu0 %v1170
    %v1238 = vpop.f32.mrf.mxu0
    %v1239 = vadd.f32 %v1168, %v1238
    %v1240 = vpop.f32.mrf.mxu0
    %1241 = vdwg.mxu0
    %vm1242 = vcmask 254976
    %1243 = vst.msk [vmem:[#allocation2] sm:$0x3] %vm1242, %v1239
    // Predicated region
    $region22: #{tpu_custom_call.1} parent=1 // pred_check
      _
    $region23: #{tpu_custom_call.1} parent=1 // pred_check_branch
      %1245 = sbr.rel (0) target = $region25
    $region24: #{tpu_custom_call.1} parent=1 // pred_region
      %s1247 = ssub.s32 32, 32
      %1248 = vsyncadd [#allocation3], %s1247
      %s1250 = sshll.u32 [#allocation2], 4
      %s1251 = int_to_ptr.vmem [resolvable:$true] %s1250
      %1253 = dma.vmem_to_hbm [thread:$0]  %s1251, 32, %s5, [#allocation3]
    $region25: #{tpu_custom_call.1} parent=1 // pred_fallthru
      _
    // Predicated region
    $region26: #{tpu_custom_call.1} parent=1 // pred_check
      _
    $region27: #{tpu_custom_call.1} parent=1 // pred_check_branch
      %1255 = sbr.rel (0) target = $region29
    $region28: #{tpu_custom_call.1} parent=1 // pred_region
      %1256 = dma.done [#allocation3], 32
    $region29: #{tpu_custom_call.1} parent=1 // pred_fallthru
      _
    %1257 = vsyncpa [#allocation3], 1

</llo_original>
